<compile_context>
chip_gen: v7x
topology: tpu7x:2x2x1
jax: 0.10.0
libtpu: 0.0.40
codegen_flags: <defaults>
</compile_context>

<pallas_src>
import jax
import jax.numpy as jnp
from jax.experimental import pallas as pl
from jax.experimental.pallas import tpu as pltpu


def _conv2d_kernel(w_ref, b_ref, x_ref, o_ref):
    # w_ref: SMEM (Cout*Cin*KH*KW,) f32, flattened in OIHW order
    # b_ref: SMEM (Cout,) f32
    # x_ref: VMEM (Nb, Cin, H, W)      -- NCHW, W on the lane axis
    # o_ref: VMEM (Nb, Cout, Ho, Wo)
    Nb, Cin, H, W = x_ref.shape
    _, Cout, Ho, Wo = o_ref.shape
    KH = H - Ho + 1
    KW = W - Wo + 1

    # Single load of the (tiny) input block; every tap is a static slice of it.
    x = x_ref[...].astype(jnp.float32)

    # One live accumulator per output channel; bias folded into the init.
    accs = [jnp.full((Nb, Ho, Wo), b_ref[co], dtype=jnp.float32)
            for co in range(Cout)]

    for ci in range(Cin):
        xc = x[:, ci, :, :]                         # (Nb, H, W)
        for kw in range(KW):
            # Lane shift built ONCE per (ci, kw): Cin*KW = 9 lane relayouts total.
            x_kw = xc[:, :, kw:kw + Wo]             # (Nb, H, Wo)
            for kh in range(KH):
                # Cheap sublane slice, reused across all output channels.
                win = x_kw[:, kh:kh + Ho, :]        # (Nb, Ho, Wo)
                for co in range(Cout):
                    w_sc = w_ref[((co * Cin + ci) * KH + kh) * KW + kw]
                    accs[co] = accs[co] + win * w_sc

    # Single bulk store: channel-axis stack is sublane-tile placement (no lane
    # relayout); one full-ref store instead of Cout strided partial stores.
    o_ref[...] = jnp.stack(accs, axis=1).astype(o_ref.dtype)


def conv2d_pallas(x_nchw, w_oihw, b):
    """Conv2d, stride=1, padding=0 ('valid'). (N, Cin, H, W) -> (N, Cout, Ho, Wo)."""
    N, Cin, H, W = x_nchw.shape
    Cout, _, KH, KW = w_oihw.shape
    Ho, Wo = H - KH + 1, W - KW + 1

    # Tiny parameter tensors go to SMEM as flat 1-D arrays (no padded VMEM tiles).
    w_flat = w_oihw.reshape(-1).astype(jnp.float32)          # (Cout*Cin*KH*KW,)
    b_flat = b.reshape(-1).astype(jnp.float32)               # (Cout,)

    itemsize = jnp.dtype(x_nchw.dtype).itemsize
    in_bytes = N * Cin * H * W * itemsize
    out_bytes = N * Cout * Ho * Wo * itemsize
    cost = pl.CostEstimate(
        flops=2 * N * Cout * Ho * Wo * Cin * KH * KW,
        transcendentals=0,
        bytes_accessed=in_bytes + out_bytes + 4 * (w_flat.size + b_flat.size),
    )

    smem_spec = pl.BlockSpec(memory_space=pltpu.MemorySpace.SMEM)
    out_shape = jax.ShapeDtypeStruct((N, Cout, Ho, Wo), x_nchw.dtype)

    # Toy / small sizes: whole batch in one block, no grid (per-grid-step
    # overhead would dominate the ~64 KFLOPs of work).
    if in_bytes + out_bytes <= 8 * 1024 * 1024:
        return pl.pallas_call(
            _conv2d_kernel,
            out_shape=out_shape,
            in_specs=[
                smem_spec,                                        # weights (scalars)
                smem_spec,                                        # bias (scalars)
                pl.BlockSpec(memory_space=pltpu.MemorySpace.VMEM)  # whole input
            ],
            out_specs=pl.BlockSpec(memory_space=pltpu.MemorySpace.VMEM),
            cost_estimate=cost,
        )(w_flat, b_flat, x_nchw)

    # Scaling guard: large batches get a 1-D parallel grid over N so the VMEM
    # footprint stays bounded (v7x: 64 MiB physical) and v7x's second
    # TensorCore is used.  Not exercised at the toy test shape.
    return pl.pallas_call(
        _conv2d_kernel,
        out_shape=out_shape,
        grid=(N,),
        in_specs=[
            smem_spec,
            smem_spec,
            pl.BlockSpec((1, Cin, H, W), lambda n: (n, 0, 0, 0)),
        ],
        out_specs=pl.BlockSpec((1, Cout, Ho, Wo), lambda n: (n, 0, 0, 0)),
        cost_estimate=cost,
        compiler_params=pltpu.CompilerParams(
            dimension_semantics=("parallel",),
            vmem_limit_bytes=64 * 1024 * 1024,
        ),
    )(w_flat, b_flat, x_nchw)


def init_params(key):
    # Deterministic init mimicking PyTorch Conv2d default (uniform +/- 1/sqrt(fan_in)).
    Cout, Cin, KH, KW = 3, 3, 3, 3
    fan_in = Cin * KH * KW
    bound = 1.0 / (fan_in ** 0.5)
    kw_, kb_ = jax.random.split(key)
    w = jax.random.uniform(kw_, (Cout, Cin, KH, KW), jnp.float32, -bound, bound)
    b = jax.random.uniform(kb_, (Cout,), jnp.float32, -bound, bound)
    return w, b


if __name__ == "__main__":
    key = jax.random.PRNGKey(0)
    k_x, k_p = jax.random.split(key)

    # Small NCHW input consistent with Conv2d(3, 3, 3): (batch=2, C=3, H=16, W=16)
    x = jax.random.normal(k_x, (2, 3, 16, 16), jnp.float32)
    w, b = init_params(k_p)

    out = conv2d_pallas(x, w, b)
    out = jax.block_until_ready(out)
    assert out.shape == (2, 3, 14, 14), out.shape

    # Sanity-check against XLA's conv.
    ref = jax.lax.conv_general_dilated(
        x, w, window_strides=(1, 1), padding="VALID",
        dimension_numbers=("NCHW", "OIHW", "NCHW"),
    ) + b.reshape(1, -1, 1, 1)
    assert jnp.allclose(out, ref, atol=1e-4, rtol=1e-4)

    print("KERNEL_OK")
</pallas_src>

<mosaic_0001>
module attributes {stable_mosaic.version = 11 : i64} {
  func.func @_conv2d_kernel(%arg0: memref<81xf32, #tpu.memory_space<smem>>, %arg1: memref<3xf32, #tpu.memory_space<smem>>, %arg2: memref<2x3x16x16xf32, #tpu.memory_space<vmem>>, %arg3: memref<2x3x14x14xf32, #tpu.memory_space<vmem>>) attributes {dimension_semantics = [], scalar_prefetch = 0 : i64, scratch_operands = 0 : i64, tpu.core_type = #tpu.core_type<tc>} {
    %c0 = arith.constant 0 : index
    %c0_0 = arith.constant 0 : index
    %c0_1 = arith.constant 0 : index
    %c0_2 = arith.constant 0 : index
    %0 = vector.load %arg2[%c0, %c0_0, %c0_1, %c0_2] : memref<2x3x16x16xf32, #tpu.memory_space<vmem>>, vector<2x3x16x16xf32>
    %c0_3 = arith.constant 0 : index
    %1 = memref.load %arg1[%c0_3] : memref<3xf32, #tpu.memory_space<smem>>
    %2 = vector.broadcast %1 : f32 to vector<2x14x14xf32>
    %c1 = arith.constant 1 : index
    %3 = memref.load %arg1[%c1] : memref<3xf32, #tpu.memory_space<smem>>
    %4 = vector.broadcast %3 : f32 to vector<2x14x14xf32>
    %c2 = arith.constant 2 : index
    %5 = memref.load %arg1[%c2] : memref<3xf32, #tpu.memory_space<smem>>
    %6 = vector.broadcast %5 : f32 to vector<2x14x14xf32>
    %7 = vector.extract_strided_slice %0 {offsets = [0, 0, 0, 0], sizes = [2, 1, 16, 16], strides = [1, 1, 1, 1]} : vector<2x3x16x16xf32> to vector<2x1x16x16xf32>
    %8 = vector.shape_cast %7 : vector<2x1x16x16xf32> to vector<2x16x16xf32>
    %9 = vector.extract_strided_slice %8 {offsets = [0, 0, 0], sizes = [2, 16, 14], strides = [1, 1, 1]} : vector<2x16x16xf32> to vector<2x16x14xf32>
    %10 = vector.extract_strided_slice %9 {offsets = [0, 0, 0], sizes = [2, 14, 14], strides = [1, 1, 1]} : vector<2x16x14xf32> to vector<2x14x14xf32>
    %c0_4 = arith.constant 0 : index
    %11 = memref.load %arg0[%c0_4] : memref<81xf32, #tpu.memory_space<smem>>
    %12 = vector.broadcast %11 : f32 to vector<2x14x14xf32>
    %13 = arith.mulf %10, %12 : vector<2x14x14xf32>
    %14 = arith.addf %2, %13 : vector<2x14x14xf32>
    %c27 = arith.constant 27 : index
    %15 = memref.load %arg0[%c27] : memref<81xf32, #tpu.memory_space<smem>>
    %16 = vector.broadcast %15 : f32 to vector<2x14x14xf32>
    %17 = arith.mulf %10, %16 : vector<2x14x14xf32>
    %18 = arith.addf %4, %17 : vector<2x14x14xf32>
    %c54 = arith.constant 54 : index
    %19 = memref.load %arg0[%c54] : memref<81xf32, #tpu.memory_space<smem>>
    %20 = vector.broadcast %19 : f32 to vector<2x14x14xf32>
    %21 = arith.mulf %10, %20 : vector<2x14x14xf32>
    %22 = arith.addf %6, %21 : vector<2x14x14xf32>
    %23 = vector.extract_strided_slice %9 {offsets = [0, 1, 0], sizes = [2, 14, 14], strides = [1, 1, 1]} : vector<2x16x14xf32> to vector<2x14x14xf32>
    %c3 = arith.constant 3 : index
    %24 = memref.load %arg0[%c3] : memref<81xf32, #tpu.memory_space<smem>>
    %25 = vector.broadcast %24 : f32 to vector<2x14x14xf32>
    %26 = arith.mulf %23, %25 : vector<2x14x14xf32>
    %27 = arith.addf %14, %26 : vector<2x14x14xf32>
    %c30 = arith.constant 30 : index
    %28 = memref.load %arg0[%c30] : memref<81xf32, #tpu.memory_space<smem>>
    %29 = vector.broadcast %28 : f32 to vector<2x14x14xf32>
    %30 = arith.mulf %23, %29 : vector<2x14x14xf32>
    %31 = arith.addf %18, %30 : vector<2x14x14xf32>
    %c57 = arith.constant 57 : index
    %32 = memref.load %arg0[%c57] : memref<81xf32, #tpu.memory_space<smem>>
    %33 = vector.broadcast %32 : f32 to vector<2x14x14xf32>
    %34 = arith.mulf %23, %33 : vector<2x14x14xf32>
    %35 = arith.addf %22, %34 : vector<2x14x14xf32>
    %36 = vector.extract_strided_slice %9 {offsets = [0, 2, 0], sizes = [2, 14, 14], strides = [1, 1, 1]} : vector<2x16x14xf32> to vector<2x14x14xf32>
    %c6 = arith.constant 6 : index
    %37 = memref.load %arg0[%c6] : memref<81xf32, #tpu.memory_space<smem>>
    %38 = vector.broadcast %37 : f32 to vector<2x14x14xf32>
    %39 = arith.mulf %36, %38 : vector<2x14x14xf32>
    %40 = arith.addf %27, %39 : vector<2x14x14xf32>
    %c33 = arith.constant 33 : index
    %41 = memref.load %arg0[%c33] : memref<81xf32, #tpu.memory_space<smem>>
    %42 = vector.broadcast %41 : f32 to vector<2x14x14xf32>
    %43 = arith.mulf %36, %42 : vector<2x14x14xf32>
    %44 = arith.addf %31, %43 : vector<2x14x14xf32>
    %c60 = arith.constant 60 : index
    %45 = memref.load %arg0[%c60] : memref<81xf32, #tpu.memory_space<smem>>
    %46 = vector.broadcast %45 : f32 to vector<2x14x14xf32>
    %47 = arith.mulf %36, %46 : vector<2x14x14xf32>
    %48 = arith.addf %35, %47 : vector<2x14x14xf32>
    %49 = vector.extract_strided_slice %8 {offsets = [0, 0, 1], sizes = [2, 16, 14], strides = [1, 1, 1]} : vector<2x16x16xf32> to vector<2x16x14xf32>
    %50 = vector.extract_strided_slice %49 {offsets = [0, 0, 0], sizes = [2, 14, 14], strides = [1, 1, 1]} : vector<2x16x14xf32> to vector<2x14x14xf32>
    %c1_5 = arith.constant 1 : index
    %51 = memref.load %arg0[%c1_5] : memref<81xf32, #tpu.memory_space<smem>>
    %52 = vector.broadcast %51 : f32 to vector<2x14x14xf32>
    %53 = arith.mulf %50, %52 : vector<2x14x14xf32>
    %54 = arith.addf %40, %53 : vector<2x14x14xf32>
    %c28 = arith.constant 28 : index
    %55 = memref.load %arg0[%c28] : memref<81xf32, #tpu.memory_space<smem>>
    %56 = vector.broadcast %55 : f32 to vector<2x14x14xf32>
    %57 = arith.mulf %50, %56 : vector<2x14x14xf32>
    %58 = arith.addf %44, %57 : vector<2x14x14xf32>
    %c55 = arith.constant 55 : index
    %59 = memref.load %arg0[%c55] : memref<81xf32, #tpu.memory_space<smem>>
    %60 = vector.broadcast %59 : f32 to vector<2x14x14xf32>
    %61 = arith.mulf %50, %60 : vector<2x14x14xf32>
    %62 = arith.addf %48, %61 : vector<2x14x14xf32>
    %63 = vector.extract_strided_slice %49 {offsets = [0, 1, 0], sizes = [2, 14, 14], strides = [1, 1, 1]} : vector<2x16x14xf32> to vector<2x14x14xf32>
    %c4 = arith.constant 4 : index
    %64 = memref.load %arg0[%c4] : memref<81xf32, #tpu.memory_space<smem>>
    %65 = vector.broadcast %64 : f32 to vector<2x14x14xf32>
    %66 = arith.mulf %63, %65 : vector<2x14x14xf32>
    %67 = arith.addf %54, %66 : vector<2x14x14xf32>
    %c31 = arith.constant 31 : index
    %68 = memref.load %arg0[%c31] : memref<81xf32, #tpu.memory_space<smem>>
    %69 = vector.broadcast %68 : f32 to vector<2x14x14xf32>
    %70 = arith.mulf %63, %69 : vector<2x14x14xf32>
    %71 = arith.addf %58, %70 : vector<2x14x14xf32>
    %c58 = arith.constant 58 : index
    %72 = memref.load %arg0[%c58] : memref<81xf32, #tpu.memory_space<smem>>
    %73 = vector.broadcast %72 : f32 to vector<2x14x14xf32>
    %74 = arith.mulf %63, %73 : vector<2x14x14xf32>
    %75 = arith.addf %62, %74 : vector<2x14x14xf32>
    %76 = vector.extract_strided_slice %49 {offsets = [0, 2, 0], sizes = [2, 14, 14], strides = [1, 1, 1]} : vector<2x16x14xf32> to vector<2x14x14xf32>
    %c7 = arith.constant 7 : index
    %77 = memref.load %arg0[%c7] : memref<81xf32, #tpu.memory_space<smem>>
    %78 = vector.broadcast %77 : f32 to vector<2x14x14xf32>
    %79 = arith.mulf %76, %78 : vector<2x14x14xf32>
    %80 = arith.addf %67, %79 : vector<2x14x14xf32>
    %c34 = arith.constant 34 : index
    %81 = memref.load %arg0[%c34] : memref<81xf32, #tpu.memory_space<smem>>
    %82 = vector.broadcast %81 : f32 to vector<2x14x14xf32>
    %83 = arith.mulf %76, %82 : vector<2x14x14xf32>
    %84 = arith.addf %71, %83 : vector<2x14x14xf32>
    %c61 = arith.constant 61 : index
    %85 = memref.load %arg0[%c61] : memref<81xf32, #tpu.memory_space<smem>>
    %86 = vector.broadcast %85 : f32 to vector<2x14x14xf32>
    %87 = arith.mulf %76, %86 : vector<2x14x14xf32>
    %88 = arith.addf %75, %87 : vector<2x14x14xf32>
    %89 = vector.extract_strided_slice %8 {offsets = [0, 0, 2], sizes = [2, 16, 14], strides = [1, 1, 1]} : vector<2x16x16xf32> to vector<2x16x14xf32>
    %90 = vector.extract_strided_slice %89 {offsets = [0, 0, 0], sizes = [2, 14, 14], strides = [1, 1, 1]} : vector<2x16x14xf32> to vector<2x14x14xf32>
    %c2_6 = arith.constant 2 : index
    %91 = memref.load %arg0[%c2_6] : memref<81xf32, #tpu.memory_space<smem>>
    %92 = vector.broadcast %91 : f32 to vector<2x14x14xf32>
    %93 = arith.mulf %90, %92 : vector<2x14x14xf32>
    %94 = arith.addf %80, %93 : vector<2x14x14xf32>
    %c29 = arith.constant 29 : index
    %95 = memref.load %arg0[%c29] : memref<81xf32, #tpu.memory_space<smem>>
    %96 = vector.broadcast %95 : f32 to vector<2x14x14xf32>
    %97 = arith.mulf %90, %96 : vector<2x14x14xf32>
    %98 = arith.addf %84, %97 : vector<2x14x14xf32>
    %c56 = arith.constant 56 : index
    %99 = memref.load %arg0[%c56] : memref<81xf32, #tpu.memory_space<smem>>
    %100 = vector.broadcast %99 : f32 to vector<2x14x14xf32>
    %101 = arith.mulf %90, %100 : vector<2x14x14xf32>
    %102 = arith.addf %88, %101 : vector<2x14x14xf32>
    %103 = vector.extract_strided_slice %89 {offsets = [0, 1, 0], sizes = [2, 14, 14], strides = [1, 1, 1]} : vector<2x16x14xf32> to vector<2x14x14xf32>
    %c5 = arith.constant 5 : index
    %104 = memref.load %arg0[%c5] : memref<81xf32, #tpu.memory_space<smem>>
    %105 = vector.broadcast %104 : f32 to vector<2x14x14xf32>
    %106 = arith.mulf %103, %105 : vector<2x14x14xf32>
    %107 = arith.addf %94, %106 : vector<2x14x14xf32>
    %c32 = arith.constant 32 : index
    %108 = memref.load %arg0[%c32] : memref<81xf32, #tpu.memory_space<smem>>
    %109 = vector.broadcast %108 : f32 to vector<2x14x14xf32>
    %110 = arith.mulf %103, %109 : vector<2x14x14xf32>
    %111 = arith.addf %98, %110 : vector<2x14x14xf32>
    %c59 = arith.constant 59 : index
    %112 = memref.load %arg0[%c59] : memref<81xf32, #tpu.memory_space<smem>>
    %113 = vector.broadcast %112 : f32 to vector<2x14x14xf32>
    %114 = arith.mulf %103, %113 : vector<2x14x14xf32>
    %115 = arith.addf %102, %114 : vector<2x14x14xf32>
    %116 = vector.extract_strided_slice %89 {offsets = [0, 2, 0], sizes = [2, 14, 14], strides = [1, 1, 1]} : vector<2x16x14xf32> to vector<2x14x14xf32>
    %c8 = arith.constant 8 : index
    %117 = memref.load %arg0[%c8] : memref<81xf32, #tpu.memory_space<smem>>
    %118 = vector.broadcast %117 : f32 to vector<2x14x14xf32>
    %119 = arith.mulf %116, %118 : vector<2x14x14xf32>
    %120 = arith.addf %107, %119 : vector<2x14x14xf32>
    %c35 = arith.constant 35 : index
    %121 = memref.load %arg0[%c35] : memref<81xf32, #tpu.memory_space<smem>>
    %122 = vector.broadcast %121 : f32 to vector<2x14x14xf32>
    %123 = arith.mulf %116, %122 : vector<2x14x14xf32>
    %124 = arith.addf %111, %123 : vector<2x14x14xf32>
    %c62 = arith.constant 62 : index
    %125 = memref.load %arg0[%c62] : memref<81xf32, #tpu.memory_space<smem>>
    %126 = vector.broadcast %125 : f32 to vector<2x14x14xf32>
    %127 = arith.mulf %116, %126 : vector<2x14x14xf32>
    %128 = arith.addf %115, %127 : vector<2x14x14xf32>
    %129 = vector.extract_strided_slice %0 {offsets = [0, 1, 0, 0], sizes = [2, 1, 16, 16], strides = [1, 1, 1, 1]} : vector<2x3x16x16xf32> to vector<2x1x16x16xf32>
    %130 = vector.shape_cast %129 : vector<2x1x16x16xf32> to vector<2x16x16xf32>
    %131 = vector.extract_strided_slice %130 {offsets = [0, 0, 0], sizes = [2, 16, 14], strides = [1, 1, 1]} : vector<2x16x16xf32> to vector<2x16x14xf32>
    %132 = vector.extract_strided_slice %131 {offsets = [0, 0, 0], sizes = [2, 14, 14], strides = [1, 1, 1]} : vector<2x16x14xf32> to vector<2x14x14xf32>
    %c9 = arith.constant 9 : index
    %133 = memref.load %arg0[%c9] : memref<81xf32, #tpu.memory_space<smem>>
    %134 = vector.broadcast %133 : f32 to vector<2x14x14xf32>
    %135 = arith.mulf %132, %134 : vector<2x14x14xf32>
    %136 = arith.addf %120, %135 : vector<2x14x14xf32>
    %c36 = arith.constant 36 : index
    %137 = memref.load %arg0[%c36] : memref<81xf32, #tpu.memory_space<smem>>
    %138 = vector.broadcast %137 : f32 to vector<2x14x14xf32>
    %139 = arith.mulf %132, %138 : vector<2x14x14xf32>
    %140 = arith.addf %124, %139 : vector<2x14x14xf32>
    %c63 = arith.constant 63 : index
    %141 = memref.load %arg0[%c63] : memref<81xf32, #tpu.memory_space<smem>>
    %142 = vector.broadcast %141 : f32 to vector<2x14x14xf32>
    %143 = arith.mulf %132, %142 : vector<2x14x14xf32>
    %144 = arith.addf %128, %143 : vector<2x14x14xf32>
    %145 = vector.extract_strided_slice %131 {offsets = [0, 1, 0], sizes = [2, 14, 14], strides = [1, 1, 1]} : vector<2x16x14xf32> to vector<2x14x14xf32>
    %c12 = arith.constant 12 : index
    %146 = memref.load %arg0[%c12] : memref<81xf32, #tpu.memory_space<smem>>
    %147 = vector.broadcast %146 : f32 to vector<2x14x14xf32>
    %148 = arith.mulf %145, %147 : vector<2x14x14xf32>
    %149 = arith.addf %136, %148 : vector<2x14x14xf32>
    %c39 = arith.constant 39 : index
    %150 = memref.load %arg0[%c39] : memref<81xf32, #tpu.memory_space<smem>>
    %151 = vector.broadcast %150 : f32 to vector<2x14x14xf32>
    %152 = arith.mulf %145, %151 : vector<2x14x14xf32>
    %153 = arith.addf %140, %152 : vector<2x14x14xf32>
    %c66 = arith.constant 66 : index
    %154 = memref.load %arg0[%c66] : memref<81xf32, #tpu.memory_space<smem>>
    %155 = vector.broadcast %154 : f32 to vector<2x14x14xf32>
    %156 = arith.mulf %145, %155 : vector<2x14x14xf32>
    %157 = arith.addf %144, %156 : vector<2x14x14xf32>
    %158 = vector.extract_strided_slice %131 {offsets = [0, 2, 0], sizes = [2, 14, 14], strides = [1, 1, 1]} : vector<2x16x14xf32> to vector<2x14x14xf32>
    %c15 = arith.constant 15 : index
    %159 = memref.load %arg0[%c15] : memref<81xf32, #tpu.memory_space<smem>>
    %160 = vector.broadcast %159 : f32 to vector<2x14x14xf32>
    %161 = arith.mulf %158, %160 : vector<2x14x14xf32>
    %162 = arith.addf %149, %161 : vector<2x14x14xf32>
    %c42 = arith.constant 42 : index
    %163 = memref.load %arg0[%c42] : memref<81xf32, #tpu.memory_space<smem>>
    %164 = vector.broadcast %163 : f32 to vector<2x14x14xf32>
    %165 = arith.mulf %158, %164 : vector<2x14x14xf32>
    %166 = arith.addf %153, %165 : vector<2x14x14xf32>
    %c69 = arith.constant 69 : index
    %167 = memref.load %arg0[%c69] : memref<81xf32, #tpu.memory_space<smem>>
    %168 = vector.broadcast %167 : f32 to vector<2x14x14xf32>
    %169 = arith.mulf %158, %168 : vector<2x14x14xf32>
    %170 = arith.addf %157, %169 : vector<2x14x14xf32>
    %171 = vector.extract_strided_slice %130 {offsets = [0, 0, 1], sizes = [2, 16, 14], strides = [1, 1, 1]} : vector<2x16x16xf32> to vector<2x16x14xf32>
    %172 = vector.extract_strided_slice %171 {offsets = [0, 0, 0], sizes = [2, 14, 14], strides = [1, 1, 1]} : vector<2x16x14xf32> to vector<2x14x14xf32>
    %c10 = arith.constant 10 : index
    %173 = memref.load %arg0[%c10] : memref<81xf32, #tpu.memory_space<smem>>
    %174 = vector.broadcast %173 : f32 to vector<2x14x14xf32>
    %175 = arith.mulf %172, %174 : vector<2x14x14xf32>
    %176 = arith.addf %162, %175 : vector<2x14x14xf32>
    %c37 = arith.constant 37 : index
    %177 = memref.load %arg0[%c37] : memref<81xf32, #tpu.memory_space<smem>>
    %178 = vector.broadcast %177 : f32 to vector<2x14x14xf32>
    %179 = arith.mulf %172, %178 : vector<2x14x14xf32>
    %180 = arith.addf %166, %179 : vector<2x14x14xf32>
    %c64 = arith.constant 64 : index
    %181 = memref.load %arg0[%c64] : memref<81xf32, #tpu.memory_space<smem>>
    %182 = vector.broadcast %181 : f32 to vector<2x14x14xf32>
    %183 = arith.mulf %172, %182 : vector<2x14x14xf32>
    %184 = arith.addf %170, %183 : vector<2x14x14xf32>
    %185 = vector.extract_strided_slice %171 {offsets = [0, 1, 0], sizes = [2, 14, 14], strides = [1, 1, 1]} : vector<2x16x14xf32> to vector<2x14x14xf32>
    %c13 = arith.constant 13 : index
    %186 = memref.load %arg0[%c13] : memref<81xf32, #tpu.memory_space<smem>>
    %187 = vector.broadcast %186 : f32 to vector<2x14x14xf32>
    %188 = arith.mulf %185, %187 : vector<2x14x14xf32>
    %189 = arith.addf %176, %188 : vector<2x14x14xf32>
    %c40 = arith.constant 40 : index
    %190 = memref.load %arg0[%c40] : memref<81xf32, #tpu.memory_space<smem>>
    %191 = vector.broadcast %190 : f32 to vector<2x14x14xf32>
    %192 = arith.mulf %185, %191 : vector<2x14x14xf32>
    %193 = arith.addf %180, %192 : vector<2x14x14xf32>
    %c67 = arith.constant 67 : index
    %194 = memref.load %arg0[%c67] : memref<81xf32, #tpu.memory_space<smem>>
    %195 = vector.broadcast %194 : f32 to vector<2x14x14xf32>
    %196 = arith.mulf %185, %195 : vector<2x14x14xf32>
    %197 = arith.addf %184, %196 : vector<2x14x14xf32>
    %198 = vector.extract_strided_slice %171 {offsets = [0, 2, 0], sizes = [2, 14, 14], strides = [1, 1, 1]} : vector<2x16x14xf32> to vector<2x14x14xf32>
    %c16 = arith.constant 16 : index
    %199 = memref.load %arg0[%c16] : memref<81xf32, #tpu.memory_space<smem>>
    %200 = vector.broadcast %199 : f32 to vector<2x14x14xf32>
    %201 = arith.mulf %198, %200 : vector<2x14x14xf32>
    %202 = arith.addf %189, %201 : vector<2x14x14xf32>
    %c43 = arith.constant 43 : index
    %203 = memref.load %arg0[%c43] : memref<81xf32, #tpu.memory_space<smem>>
    %204 = vector.broadcast %203 : f32 to vector<2x14x14xf32>
    %205 = arith.mulf %198, %204 : vector<2x14x14xf32>
    %206 = arith.addf %193, %205 : vector<2x14x14xf32>
    %c70 = arith.constant 70 : index
    %207 = memref.load %arg0[%c70] : memref<81xf32, #tpu.memory_space<smem>>
    %208 = vector.broadcast %207 : f32 to vector<2x14x14xf32>
    %209 = arith.mulf %198, %208 : vector<2x14x14xf32>
    %210 = arith.addf %197, %209 : vector<2x14x14xf32>
    %211 = vector.extract_strided_slice %130 {offsets = [0, 0, 2], sizes = [2, 16, 14], strides = [1, 1, 1]} : vector<2x16x16xf32> to vector<2x16x14xf32>
    %212 = vector.extract_strided_slice %211 {offsets = [0, 0, 0], sizes = [2, 14, 14], strides = [1, 1, 1]} : vector<2x16x14xf32> to vector<2x14x14xf32>
    %c11 = arith.constant 11 : index
    %213 = memref.load %arg0[%c11] : memref<81xf32, #tpu.memory_space<smem>>
    %214 = vector.broadcast %213 : f32 to vector<2x14x14xf32>
    %215 = arith.mulf %212, %214 : vector<2x14x14xf32>
    %216 = arith.addf %202, %215 : vector<2x14x14xf32>
    %c38 = arith.constant 38 : index
    %217 = memref.load %arg0[%c38] : memref<81xf32, #tpu.memory_space<smem>>
    %218 = vector.broadcast %217 : f32 to vector<2x14x14xf32>
    %219 = arith.mulf %212, %218 : vector<2x14x14xf32>
    %220 = arith.addf %206, %219 : vector<2x14x14xf32>
    %c65 = arith.constant 65 : index
    %221 = memref.load %arg0[%c65] : memref<81xf32, #tpu.memory_space<smem>>
    %222 = vector.broadcast %221 : f32 to vector<2x14x14xf32>
    %223 = arith.mulf %212, %222 : vector<2x14x14xf32>
    %224 = arith.addf %210, %223 : vector<2x14x14xf32>
    %225 = vector.extract_strided_slice %211 {offsets = [0, 1, 0], sizes = [2, 14, 14], strides = [1, 1, 1]} : vector<2x16x14xf32> to vector<2x14x14xf32>
    %c14 = arith.constant 14 : index
    %226 = memref.load %arg0[%c14] : memref<81xf32, #tpu.memory_space<smem>>
    %227 = vector.broadcast %226 : f32 to vector<2x14x14xf32>
    %228 = arith.mulf %225, %227 : vector<2x14x14xf32>
    %229 = arith.addf %216, %228 : vector<2x14x14xf32>
    %c41 = arith.constant 41 : index
    %230 = memref.load %arg0[%c41] : memref<81xf32, #tpu.memory_space<smem>>
    %231 = vector.broadcast %230 : f32 to vector<2x14x14xf32>
    %232 = arith.mulf %225, %231 : vector<2x14x14xf32>
    %233 = arith.addf %220, %232 : vector<2x14x14xf32>
    %c68 = arith.constant 68 : index
    %234 = memref.load %arg0[%c68] : memref<81xf32, #tpu.memory_space<smem>>
    %235 = vector.broadcast %234 : f32 to vector<2x14x14xf32>
    %236 = arith.mulf %225, %235 : vector<2x14x14xf32>
    %237 = arith.addf %224, %236 : vector<2x14x14xf32>
    %238 = vector.extract_strided_slice %211 {offsets = [0, 2, 0], sizes = [2, 14, 14], strides = [1, 1, 1]} : vector<2x16x14xf32> to vector<2x14x14xf32>
    %c17 = arith.constant 17 : index
    %239 = memref.load %arg0[%c17] : memref<81xf32, #tpu.memory_space<smem>>
    %240 = vector.broadcast %239 : f32 to vector<2x14x14xf32>
    %241 = arith.mulf %238, %240 : vector<2x14x14xf32>
    %242 = arith.addf %229, %241 : vector<2x14x14xf32>
    %c44 = arith.constant 44 : index
    %243 = memref.load %arg0[%c44] : memref<81xf32, #tpu.memory_space<smem>>
    %244 = vector.broadcast %243 : f32 to vector<2x14x14xf32>
    %245 = arith.mulf %238, %244 : vector<2x14x14xf32>
    %246 = arith.addf %233, %245 : vector<2x14x14xf32>
    %c71 = arith.constant 71 : index
    %247 = memref.load %arg0[%c71] : memref<81xf32, #tpu.memory_space<smem>>
    %248 = vector.broadcast %247 : f32 to vector<2x14x14xf32>
    %249 = arith.mulf %238, %248 : vector<2x14x14xf32>
    %250 = arith.addf %237, %249 : vector<2x14x14xf32>
    %251 = vector.extract_strided_slice %0 {offsets = [0, 2, 0, 0], sizes = [2, 1, 16, 16], strides = [1, 1, 1, 1]} : vector<2x3x16x16xf32> to vector<2x1x16x16xf32>
    %252 = vector.shape_cast %251 : vector<2x1x16x16xf32> to vector<2x16x16xf32>
    %253 = vector.extract_strided_slice %252 {offsets = [0, 0, 0], sizes = [2, 16, 14], strides = [1, 1, 1]} : vector<2x16x16xf32> to vector<2x16x14xf32>
    %254 = vector.extract_strided_slice %253 {offsets = [0, 0, 0], sizes = [2, 14, 14], strides = [1, 1, 1]} : vector<2x16x14xf32> to vector<2x14x14xf32>
    %c18 = arith.constant 18 : index
    %255 = memref.load %arg0[%c18] : memref<81xf32, #tpu.memory_space<smem>>
    %256 = vector.broadcast %255 : f32 to vector<2x14x14xf32>
    %257 = arith.mulf %254, %256 : vector<2x14x14xf32>
    %258 = arith.addf %242, %257 : vector<2x14x14xf32>
    %c45 = arith.constant 45 : index
    %259 = memref.load %arg0[%c45] : memref<81xf32, #tpu.memory_space<smem>>
    %260 = vector.broadcast %259 : f32 to vector<2x14x14xf32>
    %261 = arith.mulf %254, %260 : vector<2x14x14xf32>
    %262 = arith.addf %246, %261 : vector<2x14x14xf32>
    %c72 = arith.constant 72 : index
    %263 = memref.load %arg0[%c72] : memref<81xf32, #tpu.memory_space<smem>>
    %264 = vector.broadcast %263 : f32 to vector<2x14x14xf32>
    %265 = arith.mulf %254, %264 : vector<2x14x14xf32>
    %266 = arith.addf %250, %265 : vector<2x14x14xf32>
    %267 = vector.extract_strided_slice %253 {offsets = [0, 1, 0], sizes = [2, 14, 14], strides = [1, 1, 1]} : vector<2x16x14xf32> to vector<2x14x14xf32>
    %c21 = arith.constant 21 : index
    %268 = memref.load %arg0[%c21] : memref<81xf32, #tpu.memory_space<smem>>
    %269 = vector.broadcast %268 : f32 to vector<2x14x14xf32>
    %270 = arith.mulf %267, %269 : vector<2x14x14xf32>
    %271 = arith.addf %258, %270 : vector<2x14x14xf32>
    %c48 = arith.constant 48 : index
    %272 = memref.load %arg0[%c48] : memref<81xf32, #tpu.memory_space<smem>>
    %273 = vector.broadcast %272 : f32 to vector<2x14x14xf32>
    %274 = arith.mulf %267, %273 : vector<2x14x14xf32>
    %275 = arith.addf %262, %274 : vector<2x14x14xf32>
    %c75 = arith.constant 75 : index
    %276 = memref.load %arg0[%c75] : memref<81xf32, #tpu.memory_space<smem>>
    %277 = vector.broadcast %276 : f32 to vector<2x14x14xf32>
    %278 = arith.mulf %267, %277 : vector<2x14x14xf32>
    %279 = arith.addf %266, %278 : vector<2x14x14xf32>
    %280 = vector.extract_strided_slice %253 {offsets = [0, 2, 0], sizes = [2, 14, 14], strides = [1, 1, 1]} : vector<2x16x14xf32> to vector<2x14x14xf32>
    %c24 = arith.constant 24 : index
    %281 = memref.load %arg0[%c24] : memref<81xf32, #tpu.memory_space<smem>>
    %282 = vector.broadcast %281 : f32 to vector<2x14x14xf32>
    %283 = arith.mulf %280, %282 : vector<2x14x14xf32>
    %284 = arith.addf %271, %283 : vector<2x14x14xf32>
    %c51 = arith.constant 51 : index
    %285 = memref.load %arg0[%c51] : memref<81xf32, #tpu.memory_space<smem>>
    %286 = vector.broadcast %285 : f32 to vector<2x14x14xf32>
    %287 = arith.mulf %280, %286 : vector<2x14x14xf32>
    %288 = arith.addf %275, %287 : vector<2x14x14xf32>
    %c78 = arith.constant 78 : index
    %289 = memref.load %arg0[%c78] : memref<81xf32, #tpu.memory_space<smem>>
    %290 = vector.broadcast %289 : f32 to vector<2x14x14xf32>
    %291 = arith.mulf %280, %290 : vector<2x14x14xf32>
    %292 = arith.addf %279, %291 : vector<2x14x14xf32>
    %293 = vector.extract_strided_slice %252 {offsets = [0, 0, 1], sizes = [2, 16, 14], strides = [1, 1, 1]} : vector<2x16x16xf32> to vector<2x16x14xf32>
    %294 = vector.extract_strided_slice %293 {offsets = [0, 0, 0], sizes = [2, 14, 14], strides = [1, 1, 1]} : vector<2x16x14xf32> to vector<2x14x14xf32>
    %c19 = arith.constant 19 : index
    %295 = memref.load %arg0[%c19] : memref<81xf32, #tpu.memory_space<smem>>
    %296 = vector.broadcast %295 : f32 to vector<2x14x14xf32>
    %297 = arith.mulf %294, %296 : vector<2x14x14xf32>
    %298 = arith.addf %284, %297 : vector<2x14x14xf32>
    %c46 = arith.constant 46 : index
    %299 = memref.load %arg0[%c46] : memref<81xf32, #tpu.memory_space<smem>>
    %300 = vector.broadcast %299 : f32 to vector<2x14x14xf32>
    %301 = arith.mulf %294, %300 : vector<2x14x14xf32>
    %302 = arith.addf %288, %301 : vector<2x14x14xf32>
    %c73 = arith.constant 73 : index
    %303 = memref.load %arg0[%c73] : memref<81xf32, #tpu.memory_space<smem>>
    %304 = vector.broadcast %303 : f32 to vector<2x14x14xf32>
    %305 = arith.mulf %294, %304 : vector<2x14x14xf32>
    %306 = arith.addf %292, %305 : vector<2x14x14xf32>
    %307 = vector.extract_strided_slice %293 {offsets = [0, 1, 0], sizes = [2, 14, 14], strides = [1, 1, 1]} : vector<2x16x14xf32> to vector<2x14x14xf32>
    %c22 = arith.constant 22 : index
    %308 = memref.load %arg0[%c22] : memref<81xf32, #tpu.memory_space<smem>>
    %309 = vector.broadcast %308 : f32 to vector<2x14x14xf32>
    %310 = arith.mulf %307, %309 : vector<2x14x14xf32>
    %311 = arith.addf %298, %310 : vector<2x14x14xf32>
    %c49 = arith.constant 49 : index
    %312 = memref.load %arg0[%c49] : memref<81xf32, #tpu.memory_space<smem>>
    %313 = vector.broadcast %312 : f32 to vector<2x14x14xf32>
    %314 = arith.mulf %307, %313 : vector<2x14x14xf32>
    %315 = arith.addf %302, %314 : vector<2x14x14xf32>
    %c76 = arith.constant 76 : index
    %316 = memref.load %arg0[%c76] : memref<81xf32, #tpu.memory_space<smem>>
    %317 = vector.broadcast %316 : f32 to vector<2x14x14xf32>
    %318 = arith.mulf %307, %317 : vector<2x14x14xf32>
    %319 = arith.addf %306, %318 : vector<2x14x14xf32>
    %320 = vector.extract_strided_slice %293 {offsets = [0, 2, 0], sizes = [2, 14, 14], strides = [1, 1, 1]} : vector<2x16x14xf32> to vector<2x14x14xf32>
    %c25 = arith.constant 25 : index
    %321 = memref.load %arg0[%c25] : memref<81xf32, #tpu.memory_space<smem>>
    %322 = vector.broadcast %321 : f32 to vector<2x14x14xf32>
    %323 = arith.mulf %320, %322 : vector<2x14x14xf32>
    %324 = arith.addf %311, %323 : vector<2x14x14xf32>
    %c52 = arith.constant 52 : index
    %325 = memref.load %arg0[%c52] : memref<81xf32, #tpu.memory_space<smem>>
    %326 = vector.broadcast %325 : f32 to vector<2x14x14xf32>
    %327 = arith.mulf %320, %326 : vector<2x14x14xf32>
    %328 = arith.addf %315, %327 : vector<2x14x14xf32>
    %c79 = arith.constant 79 : index
    %329 = memref.load %arg0[%c79] : memref<81xf32, #tpu.memory_space<smem>>
    %330 = vector.broadcast %329 : f32 to vector<2x14x14xf32>
    %331 = arith.mulf %320, %330 : vector<2x14x14xf32>
    %332 = arith.addf %319, %331 : vector<2x14x14xf32>
    %333 = vector.extract_strided_slice %252 {offsets = [0, 0, 2], sizes = [2, 16, 14], strides = [1, 1, 1]} : vector<2x16x16xf32> to vector<2x16x14xf32>
    %334 = vector.extract_strided_slice %333 {offsets = [0, 0, 0], sizes = [2, 14, 14], strides = [1, 1, 1]} : vector<2x16x14xf32> to vector<2x14x14xf32>
    %c20 = arith.constant 20 : index
    %335 = memref.load %arg0[%c20] : memref<81xf32, #tpu.memory_space<smem>>
    %336 = vector.broadcast %335 : f32 to vector<2x14x14xf32>
    %337 = arith.mulf %334, %336 : vector<2x14x14xf32>
    %338 = arith.addf %324, %337 : vector<2x14x14xf32>
    %c47 = arith.constant 47 : index
    %339 = memref.load %arg0[%c47] : memref<81xf32, #tpu.memory_space<smem>>
    %340 = vector.broadcast %339 : f32 to vector<2x14x14xf32>
    %341 = arith.mulf %334, %340 : vector<2x14x14xf32>
    %342 = arith.addf %328, %341 : vector<2x14x14xf32>
    %c74 = arith.constant 74 : index
    %343 = memref.load %arg0[%c74] : memref<81xf32, #tpu.memory_space<smem>>
    %344 = vector.broadcast %343 : f32 to vector<2x14x14xf32>
    %345 = arith.mulf %334, %344 : vector<2x14x14xf32>
    %346 = arith.addf %332, %345 : vector<2x14x14xf32>
    %347 = vector.extract_strided_slice %333 {offsets = [0, 1, 0], sizes = [2, 14, 14], strides = [1, 1, 1]} : vector<2x16x14xf32> to vector<2x14x14xf32>
    %c23 = arith.constant 23 : index
    %348 = memref.load %arg0[%c23] : memref<81xf32, #tpu.memory_space<smem>>
    %349 = vector.broadcast %348 : f32 to vector<2x14x14xf32>
    %350 = arith.mulf %347, %349 : vector<2x14x14xf32>
    %351 = arith.addf %338, %350 : vector<2x14x14xf32>
    %c50 = arith.constant 50 : index
    %352 = memref.load %arg0[%c50] : memref<81xf32, #tpu.memory_space<smem>>
    %353 = vector.broadcast %352 : f32 to vector<2x14x14xf32>
    %354 = arith.mulf %347, %353 : vector<2x14x14xf32>
    %355 = arith.addf %342, %354 : vector<2x14x14xf32>
    %c77 = arith.constant 77 : index
    %356 = memref.load %arg0[%c77] : memref<81xf32, #tpu.memory_space<smem>>
    %357 = vector.broadcast %356 : f32 to vector<2x14x14xf32>
    %358 = arith.mulf %347, %357 : vector<2x14x14xf32>
    %359 = arith.addf %346, %358 : vector<2x14x14xf32>
    %360 = vector.extract_strided_slice %333 {offsets = [0, 2, 0], sizes = [2, 14, 14], strides = [1, 1, 1]} : vector<2x16x14xf32> to vector<2x14x14xf32>
    %c26 = arith.constant 26 : index
    %361 = memref.load %arg0[%c26] : memref<81xf32, #tpu.memory_space<smem>>
    %362 = vector.broadcast %361 : f32 to vector<2x14x14xf32>
    %363 = arith.mulf %360, %362 : vector<2x14x14xf32>
    %364 = arith.addf %351, %363 : vector<2x14x14xf32>
    %c53 = arith.constant 53 : index
    %365 = memref.load %arg0[%c53] : memref<81xf32, #tpu.memory_space<smem>>
    %366 = vector.broadcast %365 : f32 to vector<2x14x14xf32>
    %367 = arith.mulf %360, %366 : vector<2x14x14xf32>
    %368 = arith.addf %355, %367 : vector<2x14x14xf32>
    %c80 = arith.constant 80 : index
    %369 = memref.load %arg0[%c80] : memref<81xf32, #tpu.memory_space<smem>>
    %370 = vector.broadcast %369 : f32 to vector<2x14x14xf32>
    %371 = arith.mulf %360, %370 : vector<2x14x14xf32>
    %372 = arith.addf %359, %371 : vector<2x14x14xf32>
    %373 = vector.shape_cast %364 : vector<2x14x14xf32> to vector<2x1x14x14xf32>
    %374 = vector.shape_cast %368 : vector<2x14x14xf32> to vector<2x1x14x14xf32>
    %375 = vector.shape_cast %372 : vector<2x14x14xf32> to vector<2x1x14x14xf32>
    %376 = tpu.concatenate %373, %374, %375 in 1 : vector<2x1x14x14xf32>, vector<2x1x14x14xf32>, vector<2x1x14x14xf32> -> vector<2x3x14x14xf32>
    %c0_7 = arith.constant 0 : index
    %c0_8 = arith.constant 0 : index
    %c0_9 = arith.constant 0 : index
    %c0_10 = arith.constant 0 : index
    %377 = vector.load %arg3[%c0_7, %c0_8, %c0_9, %c0_10] : memref<2x3x14x14xf32, #tpu.memory_space<vmem>>, vector<2x3x14x14xf32>
    tpu.vector_store %arg3[%c0_7, %c0_8, %c0_9, %c0_10], %376 {strides = array<i32>} : memref<2x3x14x14xf32, #tpu.memory_space<vmem>>, vector<2x3x14x14xf32>,
    return
  }
}

</mosaic_0001>

<llo_original>
// kernel: tpu_custom_call.1
$region0: #{tpu_custom_call.1}
  #allocation0 [shape = 'u32[]', space=smem, size = 0x4, offset = 0x4, fixed_abs, tag = 'smem constant byte address 0x4 - core index']
  #allocation1 [shape = 'u32[144,128]{1,0:T(1,128)}', space=vmem, size = 0x12000, scoped, tag = 'internal scratch']
  %s0 = inlined_call_operand.hbm [shape: f32[81], index: 0, kind: input, shape index: {}]
  %s1 = inlined_call_operand.vmem [shape: f32[3], index: 1, kind: input, shape index: {}]
  %s2 = inlined_call_operand.hbm [shape: f32[2,3,16,16], index: 2, kind: input, shape index: {}]
  %s3 = inlined_call_operand.vmem [shape: f32[2,3,14,14], index: 3, kind: output, shape index: {}]
  %s4 = sld [smem:[#allocation0]]
  $region34: #{tpu_custom_call.1} parent=0
    _
  %s6 = ssub.s32 1, %s4
  %s7 = scalar_select 0, %s6, %s4
  $region1: #{tpu_custom_call.1} parent=0
    #allocation2 [shape = 'u8[512]{0}', space=smem, size = 0x200, scoped, tag = 'input window, operand 0, single buffered']
    #allocation3 [shape = 's32[1]{0}', space=sflag, size = 0x4, scoped, tag = 'scoped memory for tpu_custom_call.1']
    #allocation4 [shape = 's32[1]{0}', space=sflag, size = 0x4, scoped, tag = 'scoped memory for tpu_custom_call.1']
    #allocation5 [shape = 's32[1]{0}', space=sflag, size = 0x4, scoped, tag = 'scoped memory for tpu_custom_call.1']
    #allocation6 [shape = 'u8[512]{0}', space=smem, size = 0x200, scoped, tag = 'input window, operand 1, single buffered']
    #allocation7 [shape = 'u8[49152]{0}', space=vmem, size = 0xc000, scoped, tag = 'input window, operand 2, single buffered']
    %8 = vsyncpa [#allocation4], 0
    %9 = vsyncpa [#allocation5], 0
    %10 = vsyncpa [#allocation3], 0
    // Predicated region
    $region2: #{tpu_custom_call.1} parent=1 // pred_check
      _
    $region3: #{tpu_custom_call.1} parent=1 // pred_check_branch
      %12 = sbr.rel (0) target = $region5
    $region4: #{tpu_custom_call.1} parent=1 // pred_region
      %s14 = ssub.s32 16, 16
      %15 = vsyncadd [#allocation4], %s14
      %18 = dma.hbm_to_smem %s0, 16, [#allocation2], [#allocation4]
    $region5: #{tpu_custom_call.1} parent=1 // pred_fallthru
      _
    // Predicated region
    $region6: #{tpu_custom_call.1} parent=1 // pred_check
      _
    $region7: #{tpu_custom_call.1} parent=1 // pred_check_branch
      %20 = sbr.rel (0) target = $region9
    $region8: #{tpu_custom_call.1} parent=1 // pred_region
      %s22 = ssub.s32 16, 16
      %23 = vsyncadd [#allocation5], %s22
      %s25 = sshll.u32 %s1, 4
      %s26 = int_to_ptr.vmem [resolvable:$true] %s25
      %28 = dma.vmem_to_smem %s26, 16, [#allocation6], [#allocation5]
    $region9: #{tpu_custom_call.1} parent=1 // pred_fallthru
      _
    // Predicated region
    $region10: #{tpu_custom_call.1} parent=1 // pred_check
      _
    $region11: #{tpu_custom_call.1} parent=1 // pred_check_branch
      %30 = sbr.rel (0) target = $region13
    $region12: #{tpu_custom_call.1} parent=1 // pred_region
      %s32 = ssub.s32 1536, 1536
      %33 = vsyncadd [#allocation3], %s32
      %s34 = sshll.u32 [#allocation7], 4
      %s35 = int_to_ptr.vmem [resolvable:$true] %s34
      %40 = dma.hbm_to_vmem [thread:$0]  %s2, 1536, %s35, [#allocation3], 128, 128, 8
    $region13: #{tpu_custom_call.1} parent=1 // pred_fallthru
      _
    // Predicated region
    $region14: #{tpu_custom_call.1} parent=1 // pred_check
      _
    $region15: #{tpu_custom_call.1} parent=1 // pred_check_branch
      %42 = sbr.rel (0) target = $region17
    $region16: #{tpu_custom_call.1} parent=1 // pred_region
      %43 = dma.done [#allocation4], 16
    $region17: #{tpu_custom_call.1} parent=1 // pred_fallthru
      _
    // Predicated region
    $region18: #{tpu_custom_call.1} parent=1 // pred_check
      _
    $region19: #{tpu_custom_call.1} parent=1 // pred_check_branch
      %45 = sbr.rel (0) target = $region21
    $region20: #{tpu_custom_call.1} parent=1 // pred_region
      %46 = dma.done [#allocation5], 16
    $region21: #{tpu_custom_call.1} parent=1 // pred_fallthru
      _
    // Predicated region
    $region22: #{tpu_custom_call.1} parent=1 // pred_check
      _
    $region23: #{tpu_custom_call.1} parent=1 // pred_check_branch
      %48 = sbr.rel (0) target = $region25
    $region24: #{tpu_custom_call.1} parent=1 // pred_region
      %49 = dma.done [#allocation3], 1536
    $region25: #{tpu_custom_call.1} parent=1 // pred_fallthru
      _
    %50 = sfence
    %v51 = vld [vmem:[#allocation7] sm:$0xff]
    %v52 = vld [vmem:[#allocation7 + $0x8] sm:$0xff]
    %v53 = vld [vmem:[#allocation7 + $0x10] sm:$0xff]
    %v54 = vld [vmem:[#allocation7 + $0x18] sm:$0xff]
    %v55 = vld [vmem:[#allocation7 + $0x20] sm:$0xff]
    %v56 = vld [vmem:[#allocation7 + $0x28] sm:$0xff]
    %v57 = vld [vmem:[#allocation7 + $0x30] sm:$0xff]
    %v58 = vld [vmem:[#allocation7 + $0x38] sm:$0xff]
    %v59 = vld [vmem:[#allocation7 + $0x40] sm:$0xff]
    %v60 = vld [vmem:[#allocation7 + $0x48] sm:$0xff]
    %v61 = vld [vmem:[#allocation7 + $0x50] sm:$0xff]
    %v62 = vld [vmem:[#allocation7 + $0x58] sm:$0xff]
    %s63 = sld [smem:[#allocation6]]
    %v64 = vstv %s63
    %s65 = sld [smem:[#allocation6 + $0x1]]
    %v66 = vstv %s65
    %s67 = sld [smem:[#allocation6 + $0x2]]
    %v68 = vstv %s67
    %s69 = sld [smem:[#allocation2]]
    %v70 = vstv %s69
    %v71 = vmul.f32 %v51, %v70
    %v72 = vmul.f32 %v52, %v70
    %v73 = vmul.f32 %v57, %v70
    %v74 = vmul.f32 %v58, %v70
    %v75 = vadd.f32 %v64, %v71
    %v76 = vadd.f32 %v64, %v72
    %v77 = vadd.f32 %v64, %v73
    %v78 = vadd.f32 %v64, %v74
    %s79 = sld [smem:[#allocation2 + $0x1b]]
    %v80 = vstv %s79
    %v81 = vmul.f32 %v51, %v80
    %v82 = vmul.f32 %v52, %v80
    %v83 = vmul.f32 %v57, %v80
    %v84 = vmul.f32 %v58, %v80
    %v85 = vadd.f32 %v66, %v81
    %v86 = vadd.f32 %v66, %v82
    %v87 = vadd.f32 %v66, %v83
    %v88 = vadd.f32 %v66, %v84
    %s89 = sld [smem:[#allocation2 + $0x36]]
    %v90 = vstv %s89
    %v91 = vmul.f32 %v51, %v90
    %v92 = vmul.f32 %v52, %v90
    %v93 = vmul.f32 %v57, %v90
    %v94 = vmul.f32 %v58, %v90
    %v95 = vadd.f32 %v68, %v91
    %v96 = vadd.f32 %v68, %v92
    %v97 = vadd.f32 %v68, %v93
    %v98 = vadd.f32 %v68, %v94
    %s99 = sld [smem:[#allocation2 + $0x3]]
    %v100 = vstv %s99
    %v101 = vmul.f32 %v51, %v100
    %v102 = vmul.f32 %v52, %v100
    %v103 = vmul.f32 %v57, %v100
    %v104 = vmul.f32 %v58, %v100
    %vm109 = vcmask 1046528
    %v110 = vrot.slane %v101, 1
    %v111 = vrot.slane %v102, 1
    %v112 = vsel %vm109, %v110, %v111
    %v113 = vrot.slane %v103, 1
    %v114 = vrot.slane %v104, 1
    %v115 = vsel %vm109, %v113, %v114
    %v120 = vadd.f32 %v75, %v112
    %v121 = vadd.f32 %v76, %v111
    %v122 = vadd.f32 %v77, %v115
    %v123 = vadd.f32 %v78, %v114
    %s124 = sld [smem:[#allocation2 + $0x1e]]
    %v125 = vstv %s124
    %v126 = vmul.f32 %v51, %v125
    %v127 = vmul.f32 %v52, %v125
    %v128 = vmul.f32 %v57, %v125
    %v129 = vmul.f32 %v58, %v125
    %v134 = vrot.slane %v126, 1
    %v135 = vrot.slane %v127, 1
    %v136 = vsel %vm109, %v134, %v135
    %v137 = vrot.slane %v128, 1
    %v138 = vrot.slane %v129, 1
    %v139 = vsel %vm109, %v137, %v138
    %v144 = vadd.f32 %v85, %v136
    %v145 = vadd.f32 %v86, %v135
    %v146 = vadd.f32 %v87, %v139
    %v147 = vadd.f32 %v88, %v138
    %s148 = sld [smem:[#allocation2 + $0x39]]
    %v149 = vstv %s148
    %v150 = vmul.f32 %v51, %v149
    %v151 = vmul.f32 %v52, %v149
    %v152 = vmul.f32 %v57, %v149
    %v153 = vmul.f32 %v58, %v149
    %v158 = vrot.slane %v150, 1
    %v159 = vrot.slane %v151, 1
    %v160 = vsel %vm109, %v158, %v159
    %v161 = vrot.slane %v152, 1
    %v162 = vrot.slane %v153, 1
    %v163 = vsel %vm109, %v161, %v162
    %v168 = vadd.f32 %v95, %v160
    %v169 = vadd.f32 %v96, %v159
    %v170 = vadd.f32 %v97, %v163
    %v171 = vadd.f32 %v98, %v162
    %s172 = sld [smem:[#allocation2 + $0x6]]
    %v173 = vstv %s172
    %v174 = vmul.f32 %v51, %v173
    %v175 = vmul.f32 %v52, %v173
    %v176 = vmul.f32 %v57, %v173
    %v177 = vmul.f32 %v58, %v173
    %vm182 = vcmask 1045504
    %v183 = vrot.slane %v174, 2
    %v184 = vrot.slane %v175, 2
    %v185 = vsel %vm182, %v183, %v184
    %v186 = vrot.slane %v176, 2
    %v187 = vrot.slane %v177, 2
    %v188 = vsel %vm182, %v186, %v187
    %v193 = vadd.f32 %v120, %v185
    %v194 = vadd.f32 %v121, %v184
    %v195 = vadd.f32 %v122, %v188
    %v196 = vadd.f32 %v123, %v187
    %s197 = sld [smem:[#allocation2 + $0x21]]
    %v198 = vstv %s197
    %v199 = vmul.f32 %v51, %v198
    %v200 = vmul.f32 %v52, %v198
    %v201 = vmul.f32 %v57, %v198
    %v202 = vmul.f32 %v58, %v198
    %v207 = vrot.slane %v199, 2
    %v208 = vrot.slane %v200, 2
    %v209 = vsel %vm182, %v207, %v208
    %v210 = vrot.slane %v201, 2
    %v211 = vrot.slane %v202, 2
    %v212 = vsel %vm182, %v210, %v211
    %v217 = vadd.f32 %v144, %v209
    %v218 = vadd.f32 %v145, %v208
    %v219 = vadd.f32 %v146, %v212
    %v220 = vadd.f32 %v147, %v211
    %s221 = sld [smem:[#allocation2 + $0x3c]]
    %v222 = vstv %s221
    %v223 = vmul.f32 %v51, %v222
    %v224 = vmul.f32 %v52, %v222
    %v225 = vmul.f32 %v57, %v222
    %v226 = vmul.f32 %v58, %v222
    %v231 = vrot.slane %v223, 2
    %v232 = vrot.slane %v224, 2
    %v233 = vsel %vm182, %v231, %v232
    %v234 = vrot.slane %v225, 2
    %v235 = vrot.slane %v226, 2
    %v236 = vsel %vm182, %v234, %v235
    %v241 = vadd.f32 %v168, %v233
    %v242 = vadd.f32 %v169, %v232
    %v243 = vadd.f32 %v170, %v236
    %v244 = vadd.f32 %v171, %v235
    %s245 = sld [smem:[#allocation2 + $0x1]]
    %v246 = vstv %s245
    %v247 = vmul.f32 %v51, %v246
    %v248 = vmul.f32 %v52, %v246
    %v249 = vmul.f32 %v57, %v246
    %v250 = vmul.f32 %v58, %v246
    %255 = vrot.lane.b32.xlu0 %v247, 127
    %v256 = vpop.permute.xlu0 %255
    %257 = vrot.lane.b32.xlu0 %v248, 127
    %v258 = vpop.permute.xlu0 %257
    %259 = vrot.lane.b32.xlu0 %v249, 127
    %v260 = vpop.permute.xlu0 %259
    %261 = vrot.lane.b32.xlu0 %v250, 127
    %v262 = vpop.permute.xlu0 %261
    %v267 = vadd.f32 %v193, %v256
    %v268 = vadd.f32 %v194, %v258
    %v269 = vadd.f32 %v195, %v260
    %v270 = vadd.f32 %v196, %v262
    %s271 = sld [smem:[#allocation2 + $0x1c]]
    %v272 = vstv %s271
    %v273 = vmul.f32 %v51, %v272
    %v274 = vmul.f32 %v52, %v272
    %v275 = vmul.f32 %v57, %v272
    %v276 = vmul.f32 %v58, %v272
    %281 = vrot.lane.b32.xlu0 %v273, 127
    %v282 = vpop.permute.xlu0 %281
    %283 = vrot.lane.b32.xlu0 %v274, 127
    %v284 = vpop.permute.xlu0 %283
    %285 = vrot.lane.b32.xlu0 %v275, 127
    %v286 = vpop.permute.xlu0 %285
    %287 = vrot.lane.b32.xlu0 %v276, 127
    %v288 = vpop.permute.xlu0 %287
    %v293 = vadd.f32 %v217, %v282
    %v294 = vadd.f32 %v218, %v284
    %v295 = vadd.f32 %v219, %v286
    %v296 = vadd.f32 %v220, %v288
    %s297 = sld [smem:[#allocation2 + $0x37]]
    %v298 = vstv %s297
    %v299 = vmul.f32 %v51, %v298
    %v300 = vmul.f32 %v52, %v298
    %v301 = vmul.f32 %v57, %v298
    %v302 = vmul.f32 %v58, %v298
    %307 = vrot.lane.b32.xlu0 %v299, 127
    %v308 = vpop.permute.xlu0 %307
    %309 = vrot.lane.b32.xlu0 %v300, 127
    %v310 = vpop.permute.xlu0 %309
    %311 = vrot.lane.b32.xlu0 %v301, 127
    %v312 = vpop.permute.xlu0 %311
    %313 = vrot.lane.b32.xlu0 %v302, 127
    %v314 = vpop.permute.xlu0 %313
    %v319 = vadd.f32 %v241, %v308
    %v320 = vadd.f32 %v242, %v310
    %v321 = vadd.f32 %v243, %v312
    %v322 = vadd.f32 %v244, %v314
    %s323 = sld [smem:[#allocation2 + $0x4]]
    %v324 = vstv %s323
    %v325 = vmul.f32 %v51, %v324
    %v326 = vmul.f32 %v52, %v324
    %v327 = vmul.f32 %v57, %v324
    %v328 = vmul.f32 %v58, %v324
    %v333 = vrot.slane %v325, 1
    %v334 = vrot.slane %v326, 1
    %v335 = vsel %vm109, %v333, %v334
    %v336 = vrot.slane %v327, 1
    %v337 = vrot.slane %v328, 1
    %v338 = vsel %vm109, %v336, %v337
    %339 = vrot.lane.b32.xlu0 %v335, 127
    %v340 = vpop.permute.xlu0 %339
    %341 = vrot.lane.b32.xlu0 %v334, 127
    %v342 = vpop.permute.xlu0 %341
    %343 = vrot.lane.b32.xlu0 %v338, 127
    %v344 = vpop.permute.xlu0 %343
    %345 = vrot.lane.b32.xlu0 %v337, 127
    %v346 = vpop.permute.xlu0 %345
    %v351 = vadd.f32 %v267, %v340
    %v352 = vadd.f32 %v268, %v342
    %v353 = vadd.f32 %v269, %v344
    %v354 = vadd.f32 %v270, %v346
    %s355 = sld [smem:[#allocation2 + $0x1f]]
    %v356 = vstv %s355
    %v357 = vmul.f32 %v51, %v356
    %v358 = vmul.f32 %v52, %v356
    %v359 = vmul.f32 %v57, %v356
    %v360 = vmul.f32 %v58, %v356
    %v365 = vrot.slane %v357, 1
    %v366 = vrot.slane %v358, 1
    %v367 = vsel %vm109, %v365, %v366
    %v368 = vrot.slane %v359, 1
    %v369 = vrot.slane %v360, 1
    %v370 = vsel %vm109, %v368, %v369
    %371 = vrot.lane.b32.xlu0 %v367, 127
    %v372 = vpop.permute.xlu0 %371
    %373 = vrot.lane.b32.xlu0 %v366, 127
    %v374 = vpop.permute.xlu0 %373
    %375 = vrot.lane.b32.xlu0 %v370, 127
    %v376 = vpop.permute.xlu0 %375
    %377 = vrot.lane.b32.xlu0 %v369, 127
    %v378 = vpop.permute.xlu0 %377
    %v383 = vadd.f32 %v293, %v372
    %v384 = vadd.f32 %v294, %v374
    %v385 = vadd.f32 %v295, %v376
    %v386 = vadd.f32 %v296, %v378
    %s387 = sld [smem:[#allocation2 + $0x3a]]
    %v388 = vstv %s387
    %v389 = vmul.f32 %v51, %v388
    %v390 = vmul.f32 %v52, %v388
    %v391 = vmul.f32 %v57, %v388
    %v392 = vmul.f32 %v58, %v388
    %v397 = vrot.slane %v389, 1
    %v398 = vrot.slane %v390, 1
    %v399 = vsel %vm109, %v397, %v398
    %v400 = vrot.slane %v391, 1
    %v401 = vrot.slane %v392, 1
    %v402 = vsel %vm109, %v400, %v401
    %403 = vrot.lane.b32.xlu0 %v399, 127
    %v404 = vpop.permute.xlu0 %403
    %405 = vrot.lane.b32.xlu0 %v398, 127
    %v406 = vpop.permute.xlu0 %405
    %407 = vrot.lane.b32.xlu0 %v402, 127
    %v408 = vpop.permute.xlu0 %407
    %409 = vrot.lane.b32.xlu0 %v401, 127
    %v410 = vpop.permute.xlu0 %409
    %v415 = vadd.f32 %v319, %v404
    %v416 = vadd.f32 %v320, %v406
    %v417 = vadd.f32 %v321, %v408
    %v418 = vadd.f32 %v322, %v410
    %s419 = sld [smem:[#allocation2 + $0x7]]
    %v420 = vstv %s419
    %v421 = vmul.f32 %v51, %v420
    %v422 = vmul.f32 %v52, %v420
    %v423 = vmul.f32 %v57, %v420
    %v424 = vmul.f32 %v58, %v420
    %v429 = vrot.slane %v421, 2
    %v430 = vrot.slane %v422, 2
    %v431 = vsel %vm182, %v429, %v430
    %v432 = vrot.slane %v423, 2
    %v433 = vrot.slane %v424, 2
    %v434 = vsel %vm182, %v432, %v433
    %435 = vrot.lane.b32.xlu0 %v431, 127
    %v436 = vpop.permute.xlu0 %435
    %437 = vrot.lane.b32.xlu0 %v430, 127
    %v438 = vpop.permute.xlu0 %437
    %439 = vrot.lane.b32.xlu0 %v434, 127
    %v440 = vpop.permute.xlu0 %439
    %441 = vrot.lane.b32.xlu0 %v433, 127
    %v442 = vpop.permute.xlu0 %441
    %v447 = vadd.f32 %v351, %v436
    %v448 = vadd.f32 %v352, %v438
    %v449 = vadd.f32 %v353, %v440
    %v450 = vadd.f32 %v354, %v442
    %s451 = sld [smem:[#allocation2 + $0x22]]
    %v452 = vstv %s451
    %v453 = vmul.f32 %v51, %v452
    %v454 = vmul.f32 %v52, %v452
    %v455 = vmul.f32 %v57, %v452
    %v456 = vmul.f32 %v58, %v452
    %v461 = vrot.slane %v453, 2
    %v462 = vrot.slane %v454, 2
    %v463 = vsel %vm182, %v461, %v462
    %v464 = vrot.slane %v455, 2
    %v465 = vrot.slane %v456, 2
    %v466 = vsel %vm182, %v464, %v465
    %467 = vrot.lane.b32.xlu0 %v463, 127
    %v468 = vpop.permute.xlu0 %467
    %469 = vrot.lane.b32.xlu0 %v462, 127
    %v470 = vpop.permute.xlu0 %469
    %471 = vrot.lane.b32.xlu0 %v466, 127
    %v472 = vpop.permute.xlu0 %471
    %473 = vrot.lane.b32.xlu0 %v465, 127
    %v474 = vpop.permute.xlu0 %473
    %v479 = vadd.f32 %v383, %v468
    %v480 = vadd.f32 %v384, %v470
    %v481 = vadd.f32 %v385, %v472
    %v482 = vadd.f32 %v386, %v474
    %s483 = sld [smem:[#allocation2 + $0x3d]]
    %v484 = vstv %s483
    %v485 = vmul.f32 %v51, %v484
    %v486 = vmul.f32 %v52, %v484
    %v487 = vmul.f32 %v57, %v484
    %v488 = vmul.f32 %v58, %v484
    %v493 = vrot.slane %v485, 2
    %v494 = vrot.slane %v486, 2
    %v495 = vsel %vm182, %v493, %v494
    %v496 = vrot.slane %v487, 2
    %v497 = vrot.slane %v488, 2
    %v498 = vsel %vm182, %v496, %v497
    %499 = vrot.lane.b32.xlu0 %v495, 127
    %v500 = vpop.permute.xlu0 %499
    %501 = vrot.lane.b32.xlu0 %v494, 127
    %v502 = vpop.permute.xlu0 %501
    %503 = vrot.lane.b32.xlu0 %v498, 127
    %v504 = vpop.permute.xlu0 %503
    %505 = vrot.lane.b32.xlu0 %v497, 127
    %v506 = vpop.permute.xlu0 %505
    %v511 = vadd.f32 %v415, %v500
    %v512 = vadd.f32 %v416, %v502
    %v513 = vadd.f32 %v417, %v504
    %v514 = vadd.f32 %v418, %v506
    %s515 = sld [smem:[#allocation2 + $0x2]]
    %v516 = vstv %s515
    %v517 = vmul.f32 %v51, %v516
    %v518 = vmul.f32 %v52, %v516
    %v519 = vmul.f32 %v57, %v516
    %v520 = vmul.f32 %v58, %v516
    %525 = vrot.lane.b32.xlu0 %v517, 126
    %v526 = vpop.permute.xlu0 %525
    %527 = vrot.lane.b32.xlu0 %v518, 126
    %v528 = vpop.permute.xlu0 %527
    %529 = vrot.lane.b32.xlu0 %v519, 126
    %v530 = vpop.permute.xlu0 %529
    %531 = vrot.lane.b32.xlu0 %v520, 126
    %v532 = vpop.permute.xlu0 %531
    %v537 = vadd.f32 %v447, %v526
    %v538 = vadd.f32 %v448, %v528
    %v539 = vadd.f32 %v449, %v530
    %v540 = vadd.f32 %v450, %v532
    %s541 = sld [smem:[#allocation2 + $0x1d]]
    %v542 = vstv %s541
    %v543 = vmul.f32 %v51, %v542
    %v544 = vmul.f32 %v52, %v542
    %v545 = vmul.f32 %v57, %v542
    %v546 = vmul.f32 %v58, %v542
    %551 = vrot.lane.b32.xlu0 %v543, 126
    %v552 = vpop.permute.xlu0 %551
    %553 = vrot.lane.b32.xlu0 %v544, 126
    %v554 = vpop.permute.xlu0 %553
    %555 = vrot.lane.b32.xlu0 %v545, 126
    %v556 = vpop.permute.xlu0 %555
    %557 = vrot.lane.b32.xlu0 %v546, 126
    %v558 = vpop.permute.xlu0 %557
    %v563 = vadd.f32 %v479, %v552
    %v564 = vadd.f32 %v480, %v554
    %v565 = vadd.f32 %v481, %v556
    %v566 = vadd.f32 %v482, %v558
    %s567 = sld [smem:[#allocation2 + $0x38]]
    %v568 = vstv %s567
    %v569 = vmul.f32 %v51, %v568
    %v570 = vmul.f32 %v52, %v568
    %v571 = vmul.f32 %v57, %v568
    %v572 = vmul.f32 %v58, %v568
    %577 = vrot.lane.b32.xlu0 %v569, 126
    %v578 = vpop.permute.xlu0 %577
    %579 = vrot.lane.b32.xlu0 %v570, 126
    %v580 = vpop.permute.xlu0 %579
    %581 = vrot.lane.b32.xlu0 %v571, 126
    %v582 = vpop.permute.xlu0 %581
    %583 = vrot.lane.b32.xlu0 %v572, 126
    %v584 = vpop.permute.xlu0 %583
    %v589 = vadd.f32 %v511, %v578
    %v590 = vadd.f32 %v512, %v580
    %v591 = vadd.f32 %v513, %v582
    %v592 = vadd.f32 %v514, %v584
    %s593 = sld [smem:[#allocation2 + $0x5]]
    %v594 = vstv %s593
    %v595 = vmul.f32 %v51, %v594
    %v596 = vmul.f32 %v52, %v594
    %v597 = vmul.f32 %v57, %v594
    %v598 = vmul.f32 %v58, %v594
    %v603 = vrot.slane %v595, 1
    %v604 = vrot.slane %v596, 1
    %v605 = vsel %vm109, %v603, %v604
    %v606 = vrot.slane %v597, 1
    %v607 = vrot.slane %v598, 1
    %v608 = vsel %vm109, %v606, %v607
    %609 = vrot.lane.b32.xlu0 %v605, 126
    %v610 = vpop.permute.xlu0 %609
    %611 = vrot.lane.b32.xlu0 %v604, 126
    %v612 = vpop.permute.xlu0 %611
    %613 = vrot.lane.b32.xlu0 %v608, 126
    %v614 = vpop.permute.xlu0 %613
    %615 = vrot.lane.b32.xlu0 %v607, 126
    %v616 = vpop.permute.xlu0 %615
    %v621 = vadd.f32 %v537, %v610
    %v622 = vadd.f32 %v538, %v612
    %v623 = vadd.f32 %v539, %v614
    %v624 = vadd.f32 %v540, %v616
    %s625 = sld [smem:[#allocation2 + $0x20]]
    %v626 = vstv %s625
    %v627 = vmul.f32 %v51, %v626
    %v628 = vmul.f32 %v52, %v626
    %v629 = vmul.f32 %v57, %v626
    %v630 = vmul.f32 %v58, %v626
    %v635 = vrot.slane %v627, 1
    %v636 = vrot.slane %v628, 1
    %v637 = vsel %vm109, %v635, %v636
    %v638 = vrot.slane %v629, 1
    %v639 = vrot.slane %v630, 1
    %v640 = vsel %vm109, %v638, %v639
    %641 = vrot.lane.b32.xlu0 %v637, 126
    %v642 = vpop.permute.xlu0 %641
    %643 = vrot.lane.b32.xlu0 %v636, 126
    %v644 = vpop.permute.xlu0 %643
    %645 = vrot.lane.b32.xlu0 %v640, 126
    %v646 = vpop.permute.xlu0 %645
    %647 = vrot.lane.b32.xlu0 %v639, 126
    %v648 = vpop.permute.xlu0 %647
    %v653 = vadd.f32 %v563, %v642
    %v654 = vadd.f32 %v564, %v644
    %v655 = vadd.f32 %v565, %v646
    %v656 = vadd.f32 %v566, %v648
    %s657 = sld [smem:[#allocation2 + $0x3b]]
    %v658 = vstv %s657
    %v659 = vmul.f32 %v51, %v658
    %v660 = vmul.f32 %v52, %v658
    %v661 = vmul.f32 %v57, %v658
    %v662 = vmul.f32 %v58, %v658
    %v667 = vrot.slane %v659, 1
    %v668 = vrot.slane %v660, 1
    %v669 = vsel %vm109, %v667, %v668
    %v670 = vrot.slane %v661, 1
    %v671 = vrot.slane %v662, 1
    %v672 = vsel %vm109, %v670, %v671
    %673 = vrot.lane.b32.xlu0 %v669, 126
    %v674 = vpop.permute.xlu0 %673
    %675 = vrot.lane.b32.xlu0 %v668, 126
    %v676 = vpop.permute.xlu0 %675
    %677 = vrot.lane.b32.xlu0 %v672, 126
    %v678 = vpop.permute.xlu0 %677
    %679 = vrot.lane.b32.xlu0 %v671, 126
    %v680 = vpop.permute.xlu0 %679
    %v685 = vadd.f32 %v589, %v674
    %v686 = vadd.f32 %v590, %v676
    %v687 = vadd.f32 %v591, %v678
    %v688 = vadd.f32 %v592, %v680
    %s689 = sld [smem:[#allocation2 + $0x8]]
    %v690 = vstv %s689
    %v691 = vmul.f32 %v51, %v690
    %v692 = vmul.f32 %v52, %v690
    %v693 = vmul.f32 %v57, %v690
    %v694 = vmul.f32 %v58, %v690
    %v699 = vrot.slane %v691, 2
    %v700 = vrot.slane %v692, 2
    %v701 = vsel %vm182, %v699, %v700
    %v702 = vrot.slane %v693, 2
    %v703 = vrot.slane %v694, 2
    %v704 = vsel %vm182, %v702, %v703
    %705 = vrot.lane.b32.xlu0 %v701, 126
    %v706 = vpop.permute.xlu0 %705
    %707 = vrot.lane.b32.xlu0 %v700, 126
    %v708 = vpop.permute.xlu0 %707
    %709 = vrot.lane.b32.xlu0 %v704, 126
    %v710 = vpop.permute.xlu0 %709
    %711 = vrot.lane.b32.xlu0 %v703, 126
    %v712 = vpop.permute.xlu0 %711
    %v717 = vadd.f32 %v621, %v706
    %v718 = vadd.f32 %v622, %v708
    %v719 = vadd.f32 %v623, %v710
    %v720 = vadd.f32 %v624, %v712
    %s721 = sld [smem:[#allocation2 + $0x23]]
    %v722 = vstv %s721
    %v723 = vmul.f32 %v51, %v722
    %v724 = vmul.f32 %v52, %v722
    %v725 = vmul.f32 %v57, %v722
    %v726 = vmul.f32 %v58, %v722
    %v731 = vrot.slane %v723, 2
    %v732 = vrot.slane %v724, 2
    %v733 = vsel %vm182, %v731, %v732
    %v734 = vrot.slane %v725, 2
    %v735 = vrot.slane %v726, 2
    %v736 = vsel %vm182, %v734, %v735
    %737 = vrot.lane.b32.xlu0 %v733, 126
    %v738 = vpop.permute.xlu0 %737
    %739 = vrot.lane.b32.xlu0 %v732, 126
    %v740 = vpop.permute.xlu0 %739
    %741 = vrot.lane.b32.xlu0 %v736, 126
    %v742 = vpop.permute.xlu0 %741
    %743 = vrot.lane.b32.xlu0 %v735, 126
    %v744 = vpop.permute.xlu0 %743
    %v749 = vadd.f32 %v653, %v738
    %v750 = vadd.f32 %v654, %v740
    %v751 = vadd.f32 %v655, %v742
    %v752 = vadd.f32 %v656, %v744
    %s753 = sld [smem:[#allocation2 + $0x3e]]
    %v754 = vstv %s753
    %v755 = vmul.f32 %v51, %v754
    %v756 = vmul.f32 %v52, %v754
    %v757 = vmul.f32 %v57, %v754
    %v758 = vmul.f32 %v58, %v754
    %v763 = vrot.slane %v755, 2
    %v764 = vrot.slane %v756, 2
    %v765 = vsel %vm182, %v763, %v764
    %v766 = vrot.slane %v757, 2
    %v767 = vrot.slane %v758, 2
    %v768 = vsel %vm182, %v766, %v767
    %769 = vrot.lane.b32.xlu0 %v765, 126
    %v770 = vpop.permute.xlu0 %769
    %771 = vrot.lane.b32.xlu0 %v764, 126
    %v772 = vpop.permute.xlu0 %771
    %773 = vrot.lane.b32.xlu0 %v768, 126
    %v774 = vpop.permute.xlu0 %773
    %775 = vrot.lane.b32.xlu0 %v767, 126
    %v776 = vpop.permute.xlu0 %775
    %v781 = vadd.f32 %v685, %v770
    %v782 = vadd.f32 %v686, %v772
    %v783 = vadd.f32 %v687, %v774
    %v784 = vadd.f32 %v688, %v776
    %s785 = sld [smem:[#allocation2 + $0x9]]
    %v786 = vstv %s785
    %v787 = vmul.f32 %v53, %v786
    %v788 = vmul.f32 %v54, %v786
    %v789 = vmul.f32 %v59, %v786
    %v790 = vmul.f32 %v60, %v786
    %v791 = vadd.f32 %v717, %v787
    %v792 = vadd.f32 %v718, %v788
    %v793 = vadd.f32 %v719, %v789
    %v794 = vadd.f32 %v720, %v790
    %s795 = sld [smem:[#allocation2 + $0x24]]
    %v796 = vstv %s795
    %v797 = vmul.f32 %v53, %v796
    %v798 = vmul.f32 %v54, %v796
    %v799 = vmul.f32 %v59, %v796
    %v800 = vmul.f32 %v60, %v796
    %v801 = vadd.f32 %v749, %v797
    %v802 = vadd.f32 %v750, %v798
    %v803 = vadd.f32 %v751, %v799
    %v804 = vadd.f32 %v752, %v800
    %s805 = sld [smem:[#allocation2 + $0x3f]]
    %v806 = vstv %s805
    %v807 = vmul.f32 %v53, %v806
    %v808 = vmul.f32 %v54, %v806
    %v809 = vmul.f32 %v59, %v806
    %v810 = vmul.f32 %v60, %v806
    %v811 = vadd.f32 %v781, %v807
    %v812 = vadd.f32 %v782, %v808
    %v813 = vadd.f32 %v783, %v809
    %v814 = vadd.f32 %v784, %v810
    %s815 = sld [smem:[#allocation2 + $0xc]]
    %v816 = vstv %s815
    %v817 = vmul.f32 %v53, %v816
    %v818 = vmul.f32 %v54, %v816
    %v819 = vmul.f32 %v59, %v816
    %v820 = vmul.f32 %v60, %v816
    %v825 = vrot.slane %v817, 1
    %v826 = vrot.slane %v818, 1
    %v827 = vsel %vm109, %v825, %v826
    %v828 = vrot.slane %v819, 1
    %v829 = vrot.slane %v820, 1
    %v830 = vsel %vm109, %v828, %v829
    %v835 = vadd.f32 %v791, %v827
    %v836 = vadd.f32 %v792, %v826
    %v837 = vadd.f32 %v793, %v830
    %v838 = vadd.f32 %v794, %v829
    %s839 = sld [smem:[#allocation2 + $0x27]]
    %v840 = vstv %s839
    %v841 = vmul.f32 %v53, %v840
    %v842 = vmul.f32 %v54, %v840
    %v843 = vmul.f32 %v59, %v840
    %v844 = vmul.f32 %v60, %v840
    %v849 = vrot.slane %v841, 1
    %v850 = vrot.slane %v842, 1
    %v851 = vsel %vm109, %v849, %v850
    %v852 = vrot.slane %v843, 1
    %v853 = vrot.slane %v844, 1
    %v854 = vsel %vm109, %v852, %v853
    %v859 = vadd.f32 %v801, %v851
    %v860 = vadd.f32 %v802, %v850
    %v861 = vadd.f32 %v803, %v854
    %v862 = vadd.f32 %v804, %v853
    %s863 = sld [smem:[#allocation2 + $0x42]]
    %v864 = vstv %s863
    %v865 = vmul.f32 %v53, %v864
    %v866 = vmul.f32 %v54, %v864
    %v867 = vmul.f32 %v59, %v864
    %v868 = vmul.f32 %v60, %v864
    %v873 = vrot.slane %v865, 1
    %v874 = vrot.slane %v866, 1
    %v875 = vsel %vm109, %v873, %v874
    %v876 = vrot.slane %v867, 1
    %v877 = vrot.slane %v868, 1
    %v878 = vsel %vm109, %v876, %v877
    %v883 = vadd.f32 %v811, %v875
    %v884 = vadd.f32 %v812, %v874
    %v885 = vadd.f32 %v813, %v878
    %v886 = vadd.f32 %v814, %v877
    %s887 = sld [smem:[#allocation2 + $0xf]]
    %v888 = vstv %s887
    %v889 = vmul.f32 %v53, %v888
    %v890 = vmul.f32 %v54, %v888
    %v891 = vmul.f32 %v59, %v888
    %v892 = vmul.f32 %v60, %v888
    %v897 = vrot.slane %v889, 2
    %v898 = vrot.slane %v890, 2
    %v899 = vsel %vm182, %v897, %v898
    %v900 = vrot.slane %v891, 2
    %v901 = vrot.slane %v892, 2
    %v902 = vsel %vm182, %v900, %v901
    %v907 = vadd.f32 %v835, %v899
    %v908 = vadd.f32 %v836, %v898
    %v909 = vadd.f32 %v837, %v902
    %v910 = vadd.f32 %v838, %v901
    %s911 = sld [smem:[#allocation2 + $0x2a]]
    %v912 = vstv %s911
    %v913 = vmul.f32 %v53, %v912
    %v914 = vmul.f32 %v54, %v912
    %v915 = vmul.f32 %v59, %v912
    %v916 = vmul.f32 %v60, %v912
    %v921 = vrot.slane %v913, 2
    %v922 = vrot.slane %v914, 2
    %v923 = vsel %vm182, %v921, %v922
    %v924 = vrot.slane %v915, 2
    %v925 = vrot.slane %v916, 2
    %v926 = vsel %vm182, %v924, %v925
    %v931 = vadd.f32 %v859, %v923
    %v932 = vadd.f32 %v860, %v922
    %v933 = vadd.f32 %v861, %v926
    %v934 = vadd.f32 %v862, %v925
    %s935 = sld [smem:[#allocation2 + $0x45]]
    %v936 = vstv %s935
    %v937 = vmul.f32 %v53, %v936
    %v938 = vmul.f32 %v54, %v936
    %v939 = vmul.f32 %v59, %v936
    %v940 = vmul.f32 %v60, %v936
    %v945 = vrot.slane %v937, 2
    %v946 = vrot.slane %v938, 2
    %v947 = vsel %vm182, %v945, %v946
    %v948 = vrot.slane %v939, 2
    %v949 = vrot.slane %v940, 2
    %v950 = vsel %vm182, %v948, %v949
    %v955 = vadd.f32 %v883, %v947
    %v956 = vadd.f32 %v884, %v946
    %v957 = vadd.f32 %v885, %v950
    %v958 = vadd.f32 %v886, %v949
    %s959 = sld [smem:[#allocation2 + $0xa]]
    %v960 = vstv %s959
    %v961 = vmul.f32 %v53, %v960
    %v962 = vmul.f32 %v54, %v960
    %v963 = vmul.f32 %v59, %v960
    %v964 = vmul.f32 %v60, %v960
    %969 = vrot.lane.b32.xlu0 %v961, 127
    %v970 = vpop.permute.xlu0 %969
    %971 = vrot.lane.b32.xlu0 %v962, 127
    %v972 = vpop.permute.xlu0 %971
    %973 = vrot.lane.b32.xlu0 %v963, 127
    %v974 = vpop.permute.xlu0 %973
    %975 = vrot.lane.b32.xlu0 %v964, 127
    %v976 = vpop.permute.xlu0 %975
    %v981 = vadd.f32 %v907, %v970
    %v982 = vadd.f32 %v908, %v972
    %v983 = vadd.f32 %v909, %v974
    %v984 = vadd.f32 %v910, %v976
    %s985 = sld [smem:[#allocation2 + $0x25]]
    %v986 = vstv %s985
    %v987 = vmul.f32 %v53, %v986
    %v988 = vmul.f32 %v54, %v986
    %v989 = vmul.f32 %v59, %v986
    %v990 = vmul.f32 %v60, %v986
    %995 = vrot.lane.b32.xlu0 %v987, 127
    %v996 = vpop.permute.xlu0 %995
    %997 = vrot.lane.b32.xlu0 %v988, 127
    %v998 = vpop.permute.xlu0 %997
    %999 = vrot.lane.b32.xlu0 %v989, 127
    %v1000 = vpop.permute.xlu0 %999
    %1001 = vrot.lane.b32.xlu0 %v990, 127
    %v1002 = vpop.permute.xlu0 %1001
    %v1007 = vadd.f32 %v931, %v996
    %v1008 = vadd.f32 %v932, %v998
    %v1009 = vadd.f32 %v933, %v1000
    %v1010 = vadd.f32 %v934, %v1002
    %s1011 = sld [smem:[#allocation2 + $0x40]]
    %v1012 = vstv %s1011
    %v1013 = vmul.f32 %v53, %v1012
    %v1014 = vmul.f32 %v54, %v1012
    %v1015 = vmul.f32 %v59, %v1012
    %v1016 = vmul.f32 %v60, %v1012
    %1021 = vrot.lane.b32.xlu0 %v1013, 127
    %v1022 = vpop.permute.xlu0 %1021
    %1023 = vrot.lane.b32.xlu0 %v1014, 127
    %v1024 = vpop.permute.xlu0 %1023
    %1025 = vrot.lane.b32.xlu0 %v1015, 127
    %v1026 = vpop.permute.xlu0 %1025
    %1027 = vrot.lane.b32.xlu0 %v1016, 127
    %v1028 = vpop.permute.xlu0 %1027
    %v1033 = vadd.f32 %v955, %v1022
    %v1034 = vadd.f32 %v956, %v1024
    %v1035 = vadd.f32 %v957, %v1026
    %v1036 = vadd.f32 %v958, %v1028
    %s1037 = sld [smem:[#allocation2 + $0xd]]
    %v1038 = vstv %s1037
    %v1039 = vmul.f32 %v53, %v1038
    %v1040 = vmul.f32 %v54, %v1038
    %v1041 = vmul.f32 %v59, %v1038
    %v1042 = vmul.f32 %v60, %v1038
    %v1047 = vrot.slane %v1039, 1
    %v1048 = vrot.slane %v1040, 1
    %v1049 = vsel %vm109, %v1047, %v1048
    %v1050 = vrot.slane %v1041, 1
    %v1051 = vrot.slane %v1042, 1
    %v1052 = vsel %vm109, %v1050, %v1051
    %1053 = vrot.lane.b32.xlu0 %v1049, 127
    %v1054 = vpop.permute.xlu0 %1053
    %1055 = vrot.lane.b32.xlu0 %v1048, 127
    %v1056 = vpop.permute.xlu0 %1055
    %1057 = vrot.lane.b32.xlu0 %v1052, 127
    %v1058 = vpop.permute.xlu0 %1057
    %1059 = vrot.lane.b32.xlu0 %v1051, 127
    %v1060 = vpop.permute.xlu0 %1059
    %v1065 = vadd.f32 %v981, %v1054
    %v1066 = vadd.f32 %v982, %v1056
    %v1067 = vadd.f32 %v983, %v1058
    %v1068 = vadd.f32 %v984, %v1060
    %s1069 = sld [smem:[#allocation2 + $0x28]]
    %v1070 = vstv %s1069
    %v1071 = vmul.f32 %v53, %v1070
    %v1072 = vmul.f32 %v54, %v1070
    %v1073 = vmul.f32 %v59, %v1070
    %v1074 = vmul.f32 %v60, %v1070
    %v1079 = vrot.slane %v1071, 1
    %v1080 = vrot.slane %v1072, 1
    %v1081 = vsel %vm109, %v1079, %v1080
    %v1082 = vrot.slane %v1073, 1
    %v1083 = vrot.slane %v1074, 1
    %v1084 = vsel %vm109, %v1082, %v1083
    %1085 = vrot.lane.b32.xlu0 %v1081, 127
    %v1086 = vpop.permute.xlu0 %1085
    %1087 = vrot.lane.b32.xlu0 %v1080, 127
    %v1088 = vpop.permute.xlu0 %1087
    %1089 = vrot.lane.b32.xlu0 %v1084, 127
    %v1090 = vpop.permute.xlu0 %1089
    %1091 = vrot.lane.b32.xlu0 %v1083, 127
    %v1092 = vpop.permute.xlu0 %1091
    %v1097 = vadd.f32 %v1007, %v1086
    %v1098 = vadd.f32 %v1008, %v1088
    %v1099 = vadd.f32 %v1009, %v1090
    %v1100 = vadd.f32 %v1010, %v1092
    %s1101 = sld [smem:[#allocation2 + $0x43]]
    %v1102 = vstv %s1101
    %v1103 = vmul.f32 %v53, %v1102
    %v1104 = vmul.f32 %v54, %v1102
    %v1105 = vmul.f32 %v59, %v1102
    %v1106 = vmul.f32 %v60, %v1102
    %v1111 = vrot.slane %v1103, 1
    %v1112 = vrot.slane %v1104, 1
    %v1113 = vsel %vm109, %v1111, %v1112
    %v1114 = vrot.slane %v1105, 1
    %v1115 = vrot.slane %v1106, 1
    %v1116 = vsel %vm109, %v1114, %v1115
    %1117 = vrot.lane.b32.xlu0 %v1113, 127
    %v1118 = vpop.permute.xlu0 %1117
    %1119 = vrot.lane.b32.xlu0 %v1112, 127
    %v1120 = vpop.permute.xlu0 %1119
    %1121 = vrot.lane.b32.xlu0 %v1116, 127
    %v1122 = vpop.permute.xlu0 %1121
    %1123 = vrot.lane.b32.xlu0 %v1115, 127
    %v1124 = vpop.permute.xlu0 %1123
    %v1129 = vadd.f32 %v1033, %v1118
    %v1130 = vadd.f32 %v1034, %v1120
    %v1131 = vadd.f32 %v1035, %v1122
    %v1132 = vadd.f32 %v1036, %v1124
    %s1133 = sld [smem:[#allocation2 + $0x10]]
    %v1134 = vstv %s1133
    %v1135 = vmul.f32 %v53, %v1134
    %v1136 = vmul.f32 %v54, %v1134
    %v1137 = vmul.f32 %v59, %v1134
    %v1138 = vmul.f32 %v60, %v1134
    %v1143 = vrot.slane %v1135, 2
    %v1144 = vrot.slane %v1136, 2
    %v1145 = vsel %vm182, %v1143, %v1144
    %v1146 = vrot.slane %v1137, 2
    %v1147 = vrot.slane %v1138, 2
    %v1148 = vsel %vm182, %v1146, %v1147
    %1149 = vrot.lane.b32.xlu0 %v1145, 127
    %v1150 = vpop.permute.xlu0 %1149
    %1151 = vrot.lane.b32.xlu0 %v1144, 127
    %v1152 = vpop.permute.xlu0 %1151
    %1153 = vrot.lane.b32.xlu0 %v1148, 127
    %v1154 = vpop.permute.xlu0 %1153
    %1155 = vrot.lane.b32.xlu0 %v1147, 127
    %v1156 = vpop.permute.xlu0 %1155
    %v1161 = vadd.f32 %v1065, %v1150
    %v1162 = vadd.f32 %v1066, %v1152
    %v1163 = vadd.f32 %v1067, %v1154
    %v1164 = vadd.f32 %v1068, %v1156
    %s1165 = sld [smem:[#allocation2 + $0x2b]]
    %v1166 = vstv %s1165
    %v1167 = vmul.f32 %v53, %v1166
    %v1168 = vmul.f32 %v54, %v1166
    %v1169 = vmul.f32 %v59, %v1166
    %v1170 = vmul.f32 %v60, %v1166
    %v1175 = vrot.slane %v1167, 2
    %v1176 = vrot.slane %v1168, 2
    %v1177 = vsel %vm182, %v1175, %v1176
    %v1178 = vrot.slane %v1169, 2
    %v1179 = vrot.slane %v1170, 2
    %v1180 = vsel %vm182, %v1178, %v1179
    %1181 = vrot.lane.b32.xlu0 %v1177, 127
    %v1182 = vpop.permute.xlu0 %1181
    %1183 = vrot.lane.b32.xlu0 %v1176, 127
    %v1184 = vpop.permute.xlu0 %1183
    %1185 = vrot.lane.b32.xlu0 %v1180, 127
    %v1186 = vpop.permute.xlu0 %1185
    %1187 = vrot.lane.b32.xlu0 %v1179, 127
    %v1188 = vpop.permute.xlu0 %1187
    %v1193 = vadd.f32 %v1097, %v1182
    %v1194 = vadd.f32 %v1098, %v1184
    %v1195 = vadd.f32 %v1099, %v1186
    %v1196 = vadd.f32 %v1100, %v1188
    %s1197 = sld [smem:[#allocation2 + $0x46]]
    %v1198 = vstv %s1197
    %v1199 = vmul.f32 %v53, %v1198
    %v1200 = vmul.f32 %v54, %v1198
    %v1201 = vmul.f32 %v59, %v1198
    %v1202 = vmul.f32 %v60, %v1198
    %v1207 = vrot.slane %v1199, 2
    %v1208 = vrot.slane %v1200, 2
    %v1209 = vsel %vm182, %v1207, %v1208
    %v1210 = vrot.slane %v1201, 2
    %v1211 = vrot.slane %v1202, 2
    %v1212 = vsel %vm182, %v1210, %v1211
    %1213 = vrot.lane.b32.xlu0 %v1209, 127
    %v1214 = vpop.permute.xlu0 %1213
    %1215 = vrot.lane.b32.xlu0 %v1208, 127
    %v1216 = vpop.permute.xlu0 %1215
    %1217 = vrot.lane.b32.xlu0 %v1212, 127
    %v1218 = vpop.permute.xlu0 %1217
    %1219 = vrot.lane.b32.xlu0 %v1211, 127
    %v1220 = vpop.permute.xlu0 %1219
    %v1225 = vadd.f32 %v1129, %v1214
    %v1226 = vadd.f32 %v1130, %v1216
    %v1227 = vadd.f32 %v1131, %v1218
    %v1228 = vadd.f32 %v1132, %v1220
    %s1229 = sld [smem:[#allocation2 + $0xb]]
    %v1230 = vstv %s1229
    %v1231 = vmul.f32 %v53, %v1230
    %v1232 = vmul.f32 %v54, %v1230
    %v1233 = vmul.f32 %v59, %v1230
    %v1234 = vmul.f32 %v60, %v1230
    %1239 = vrot.lane.b32.xlu0 %v1231, 126
    %v1240 = vpop.permute.xlu0 %1239
    %1241 = vrot.lane.b32.xlu0 %v1232, 126
    %v1242 = vpop.permute.xlu0 %1241
    %1243 = vrot.lane.b32.xlu0 %v1233, 126
    %v1244 = vpop.permute.xlu0 %1243
    %1245 = vrot.lane.b32.xlu0 %v1234, 126
    %v1246 = vpop.permute.xlu0 %1245
    %v1251 = vadd.f32 %v1161, %v1240
    %v1252 = vadd.f32 %v1162, %v1242
    %v1253 = vadd.f32 %v1163, %v1244
    %v1254 = vadd.f32 %v1164, %v1246
    %s1255 = sld [smem:[#allocation2 + $0x26]]
    %v1256 = vstv %s1255
    %v1257 = vmul.f32 %v53, %v1256
    %v1258 = vmul.f32 %v54, %v1256
    %v1259 = vmul.f32 %v59, %v1256
    %v1260 = vmul.f32 %v60, %v1256
    %1265 = vrot.lane.b32.xlu0 %v1257, 126
    %v1266 = vpop.permute.xlu0 %1265
    %1267 = vrot.lane.b32.xlu0 %v1258, 126
    %v1268 = vpop.permute.xlu0 %1267
    %1269 = vrot.lane.b32.xlu0 %v1259, 126
    %v1270 = vpop.permute.xlu0 %1269
    %1271 = vrot.lane.b32.xlu0 %v1260, 126
    %v1272 = vpop.permute.xlu0 %1271
    %v1277 = vadd.f32 %v1193, %v1266
    %v1278 = vadd.f32 %v1194, %v1268
    %v1279 = vadd.f32 %v1195, %v1270
    %v1280 = vadd.f32 %v1196, %v1272
    %s1281 = sld [smem:[#allocation2 + $0x41]]
    %v1282 = vstv %s1281
    %v1283 = vmul.f32 %v53, %v1282
    %v1284 = vmul.f32 %v54, %v1282
    %v1285 = vmul.f32 %v59, %v1282
    %v1286 = vmul.f32 %v60, %v1282
    %1291 = vrot.lane.b32.xlu0 %v1283, 126
    %v1292 = vpop.permute.xlu0 %1291
    %1293 = vrot.lane.b32.xlu0 %v1284, 126
    %v1294 = vpop.permute.xlu0 %1293
    %1295 = vrot.lane.b32.xlu0 %v1285, 126
    %v1296 = vpop.permute.xlu0 %1295
    %1297 = vrot.lane.b32.xlu0 %v1286, 126
    %v1298 = vpop.permute.xlu0 %1297
    %v1303 = vadd.f32 %v1225, %v1292
    %v1304 = vadd.f32 %v1226, %v1294
    %v1305 = vadd.f32 %v1227, %v1296
    %v1306 = vadd.f32 %v1228, %v1298
    %s1307 = sld [smem:[#allocation2 + $0xe]]
    %v1308 = vstv %s1307
    %v1309 = vmul.f32 %v53, %v1308
    %v1310 = vmul.f32 %v54, %v1308
    %v1311 = vmul.f32 %v59, %v1308
    %v1312 = vmul.f32 %v60, %v1308
    %v1317 = vrot.slane %v1309, 1
    %v1318 = vrot.slane %v1310, 1
    %v1319 = vsel %vm109, %v1317, %v1318
    %v1320 = vrot.slane %v1311, 1
    %v1321 = vrot.slane %v1312, 1
    %v1322 = vsel %vm109, %v1320, %v1321
    %1323 = vrot.lane.b32.xlu0 %v1319, 126
    %v1324 = vpop.permute.xlu0 %1323
    %1325 = vrot.lane.b32.xlu0 %v1318, 126
    %v1326 = vpop.permute.xlu0 %1325
    %1327 = vrot.lane.b32.xlu0 %v1322, 126
    %v1328 = vpop.permute.xlu0 %1327
    %1329 = vrot.lane.b32.xlu0 %v1321, 126
    %v1330 = vpop.permute.xlu0 %1329
    %v1335 = vadd.f32 %v1251, %v1324
    %v1336 = vadd.f32 %v1252, %v1326
    %v1337 = vadd.f32 %v1253, %v1328
    %v1338 = vadd.f32 %v1254, %v1330
    %s1339 = sld [smem:[#allocation2 + $0x29]]
    %v1340 = vstv %s1339
    %v1341 = vmul.f32 %v53, %v1340
    %v1342 = vmul.f32 %v54, %v1340
    %v1343 = vmul.f32 %v59, %v1340
    %v1344 = vmul.f32 %v60, %v1340
    %v1349 = vrot.slane %v1341, 1
    %v1350 = vrot.slane %v1342, 1
    %v1351 = vsel %vm109, %v1349, %v1350
    %v1352 = vrot.slane %v1343, 1
    %v1353 = vrot.slane %v1344, 1
    %v1354 = vsel %vm109, %v1352, %v1353
    %1355 = vrot.lane.b32.xlu0 %v1351, 126
    %v1356 = vpop.permute.xlu0 %1355
    %1357 = vrot.lane.b32.xlu0 %v1350, 126
    %v1358 = vpop.permute.xlu0 %1357
    %1359 = vrot.lane.b32.xlu0 %v1354, 126
    %v1360 = vpop.permute.xlu0 %1359
    %1361 = vrot.lane.b32.xlu0 %v1353, 126
    %v1362 = vpop.permute.xlu0 %1361
    %v1367 = vadd.f32 %v1277, %v1356
    %v1368 = vadd.f32 %v1278, %v1358
    %v1369 = vadd.f32 %v1279, %v1360
    %v1370 = vadd.f32 %v1280, %v1362
    %s1371 = sld [smem:[#allocation2 + $0x44]]
    %v1372 = vstv %s1371
    %v1373 = vmul.f32 %v53, %v1372
    %v1374 = vmul.f32 %v54, %v1372
    %v1375 = vmul.f32 %v59, %v1372
    %v1376 = vmul.f32 %v60, %v1372
    %v1381 = vrot.slane %v1373, 1
    %v1382 = vrot.slane %v1374, 1
    %v1383 = vsel %vm109, %v1381, %v1382
    %v1384 = vrot.slane %v1375, 1
    %v1385 = vrot.slane %v1376, 1
    %v1386 = vsel %vm109, %v1384, %v1385
    %1387 = vrot.lane.b32.xlu0 %v1383, 126
    %v1388 = vpop.permute.xlu0 %1387
    %1389 = vrot.lane.b32.xlu0 %v1382, 126
    %v1390 = vpop.permute.xlu0 %1389
    %1391 = vrot.lane.b32.xlu0 %v1386, 126
    %v1392 = vpop.permute.xlu0 %1391
    %1393 = vrot.lane.b32.xlu0 %v1385, 126
    %v1394 = vpop.permute.xlu0 %1393
    %v1399 = vadd.f32 %v1303, %v1388
    %v1400 = vadd.f32 %v1304, %v1390
    %v1401 = vadd.f32 %v1305, %v1392
    %v1402 = vadd.f32 %v1306, %v1394
    %s1403 = sld [smem:[#allocation2 + $0x11]]
    %v1404 = vstv %s1403
    %v1405 = vmul.f32 %v53, %v1404
    %v1406 = vmul.f32 %v54, %v1404
    %v1407 = vmul.f32 %v59, %v1404
    %v1408 = vmul.f32 %v60, %v1404
    %v1413 = vrot.slane %v1405, 2
    %v1414 = vrot.slane %v1406, 2
    %v1415 = vsel %vm182, %v1413, %v1414
    %v1416 = vrot.slane %v1407, 2
    %v1417 = vrot.slane %v1408, 2
    %v1418 = vsel %vm182, %v1416, %v1417
    %1419 = vrot.lane.b32.xlu0 %v1415, 126
    %v1420 = vpop.permute.xlu0 %1419
    %1421 = vrot.lane.b32.xlu0 %v1414, 126
    %v1422 = vpop.permute.xlu0 %1421
    %1423 = vrot.lane.b32.xlu0 %v1418, 126
    %v1424 = vpop.permute.xlu0 %1423
    %1425 = vrot.lane.b32.xlu0 %v1417, 126
    %v1426 = vpop.permute.xlu0 %1425
    %v1431 = vadd.f32 %v1335, %v1420
    %v1432 = vadd.f32 %v1336, %v1422
    %v1433 = vadd.f32 %v1337, %v1424
    %v1434 = vadd.f32 %v1338, %v1426
    %s1435 = sld [smem:[#allocation2 + $0x2c]]
    %v1436 = vstv %s1435
    %v1437 = vmul.f32 %v53, %v1436
    %v1438 = vmul.f32 %v54, %v1436
    %v1439 = vmul.f32 %v59, %v1436
    %v1440 = vmul.f32 %v60, %v1436
    %v1445 = vrot.slane %v1437, 2
    %v1446 = vrot.slane %v1438, 2
    %v1447 = vsel %vm182, %v1445, %v1446
    %v1448 = vrot.slane %v1439, 2
    %v1449 = vrot.slane %v1440, 2
    %v1450 = vsel %vm182, %v1448, %v1449
    %1451 = vrot.lane.b32.xlu0 %v1447, 126
    %v1452 = vpop.permute.xlu0 %1451
    %1453 = vrot.lane.b32.xlu0 %v1446, 126
    %v1454 = vpop.permute.xlu0 %1453
    %1455 = vrot.lane.b32.xlu0 %v1450, 126
    %v1456 = vpop.permute.xlu0 %1455
    %1457 = vrot.lane.b32.xlu0 %v1449, 126
    %v1458 = vpop.permute.xlu0 %1457
    %v1463 = vadd.f32 %v1367, %v1452
    %v1464 = vadd.f32 %v1368, %v1454
    %v1465 = vadd.f32 %v1369, %v1456
    %v1466 = vadd.f32 %v1370, %v1458
    %s1467 = sld [smem:[#allocation2 + $0x47]]
    %v1468 = vstv %s1467
    %v1469 = vmul.f32 %v53, %v1468
    %v1470 = vmul.f32 %v54, %v1468
    %v1471 = vmul.f32 %v59, %v1468
    %v1472 = vmul.f32 %v60, %v1468
    %v1477 = vrot.slane %v1469, 2
    %v1478 = vrot.slane %v1470, 2
    %v1479 = vsel %vm182, %v1477, %v1478
    %v1480 = vrot.slane %v1471, 2
    %v1481 = vrot.slane %v1472, 2
    %v1482 = vsel %vm182, %v1480, %v1481
    %1483 = vrot.lane.b32.xlu0 %v1479, 126
    %v1484 = vpop.permute.xlu0 %1483
    %1485 = vrot.lane.b32.xlu0 %v1478, 126
    %v1486 = vpop.permute.xlu0 %1485
    %1487 = vrot.lane.b32.xlu0 %v1482, 126
    %v1488 = vpop.permute.xlu0 %1487
    %1489 = vrot.lane.b32.xlu0 %v1481, 126
    %v1490 = vpop.permute.xlu0 %1489
    %v1495 = vadd.f32 %v1399, %v1484
    %v1496 = vadd.f32 %v1400, %v1486
    %v1497 = vadd.f32 %v1401, %v1488
    %v1498 = vadd.f32 %v1402, %v1490
    %s1499 = sld [smem:[#allocation2 + $0x12]]
    %v1500 = vstv %s1499
    %v1501 = vmul.f32 %v55, %v1500
    %v1502 = vmul.f32 %v56, %v1500
    %v1503 = vmul.f32 %v61, %v1500
    %v1504 = vmul.f32 %v62, %v1500
    %v1505 = vadd.f32 %v1431, %v1501
    %v1506 = vadd.f32 %v1432, %v1502
    %v1507 = vadd.f32 %v1433, %v1503
    %v1508 = vadd.f32 %v1434, %v1504
    %s1509 = sld [smem:[#allocation2 + $0x2d]]
    %v1510 = vstv %s1509
    %v1511 = vmul.f32 %v55, %v1510
    %v1512 = vmul.f32 %v56, %v1510
    %v1513 = vmul.f32 %v61, %v1510
    %v1514 = vmul.f32 %v62, %v1510
    %v1515 = vadd.f32 %v1463, %v1511
    %v1516 = vadd.f32 %v1464, %v1512
    %v1517 = vadd.f32 %v1465, %v1513
    %v1518 = vadd.f32 %v1466, %v1514
    %s1519 = sld [smem:[#allocation2 + $0x48]]
    %v1520 = vstv %s1519
    %v1521 = vmul.f32 %v55, %v1520
    %v1522 = vmul.f32 %v56, %v1520
    %v1523 = vmul.f32 %v61, %v1520
    %v1524 = vmul.f32 %v62, %v1520
    %v1525 = vadd.f32 %v1495, %v1521
    %v1526 = vadd.f32 %v1496, %v1522
    %v1527 = vadd.f32 %v1497, %v1523
    %v1528 = vadd.f32 %v1498, %v1524
    %s1529 = sld [smem:[#allocation2 + $0x15]]
    %v1530 = vstv %s1529
    %v1531 = vmul.f32 %v55, %v1530
    %v1532 = vmul.f32 %v56, %v1530
    %v1533 = vmul.f32 %v61, %v1530
    %v1534 = vmul.f32 %v62, %v1530
    %v1539 = vrot.slane %v1531, 1
    %v1540 = vrot.slane %v1532, 1
    %v1541 = vsel %vm109, %v1539, %v1540
    %v1542 = vrot.slane %v1533, 1
    %v1543 = vrot.slane %v1534, 1
    %v1544 = vsel %vm109, %v1542, %v1543
    %v1549 = vadd.f32 %v1505, %v1541
    %v1550 = vadd.f32 %v1506, %v1540
    %v1551 = vadd.f32 %v1507, %v1544
    %v1552 = vadd.f32 %v1508, %v1543
    %s1553 = sld [smem:[#allocation2 + $0x30]]
    %v1554 = vstv %s1553
    %v1555 = vmul.f32 %v55, %v1554
    %v1556 = vmul.f32 %v56, %v1554
    %v1557 = vmul.f32 %v61, %v1554
    %v1558 = vmul.f32 %v62, %v1554
    %v1563 = vrot.slane %v1555, 1
    %v1564 = vrot.slane %v1556, 1
    %v1565 = vsel %vm109, %v1563, %v1564
    %v1566 = vrot.slane %v1557, 1
    %v1567 = vrot.slane %v1558, 1
    %v1568 = vsel %vm109, %v1566, %v1567
    %v1573 = vadd.f32 %v1515, %v1565
    %v1574 = vadd.f32 %v1516, %v1564
    %v1575 = vadd.f32 %v1517, %v1568
    %v1576 = vadd.f32 %v1518, %v1567
    %s1577 = sld [smem:[#allocation2 + $0x4b]]
    %v1578 = vstv %s1577
    %v1579 = vmul.f32 %v55, %v1578
    %v1580 = vmul.f32 %v56, %v1578
    %v1581 = vmul.f32 %v61, %v1578
    %v1582 = vmul.f32 %v62, %v1578
    %v1587 = vrot.slane %v1579, 1
    %v1588 = vrot.slane %v1580, 1
    %v1589 = vsel %vm109, %v1587, %v1588
    %v1590 = vrot.slane %v1581, 1
    %v1591 = vrot.slane %v1582, 1
    %v1592 = vsel %vm109, %v1590, %v1591
    %v1597 = vadd.f32 %v1525, %v1589
    %v1598 = vadd.f32 %v1526, %v1588
    %v1599 = vadd.f32 %v1527, %v1592
    %v1600 = vadd.f32 %v1528, %v1591
    %s1601 = sld [smem:[#allocation2 + $0x18]]
    %v1602 = vstv %s1601
    %v1603 = vmul.f32 %v55, %v1602
    %v1604 = vmul.f32 %v56, %v1602
    %v1605 = vmul.f32 %v61, %v1602
    %v1606 = vmul.f32 %v62, %v1602
    %v1611 = vrot.slane %v1603, 2
    %v1612 = vrot.slane %v1604, 2
    %v1613 = vsel %vm182, %v1611, %v1612
    %v1614 = vrot.slane %v1605, 2
    %v1615 = vrot.slane %v1606, 2
    %v1616 = vsel %vm182, %v1614, %v1615
    %v1621 = vadd.f32 %v1549, %v1613
    %v1622 = vadd.f32 %v1550, %v1612
    %v1623 = vadd.f32 %v1551, %v1616
    %v1624 = vadd.f32 %v1552, %v1615
    %s1625 = sld [smem:[#allocation2 + $0x33]]
    %v1626 = vstv %s1625
    %v1627 = vmul.f32 %v55, %v1626
    %v1628 = vmul.f32 %v56, %v1626
    %v1629 = vmul.f32 %v61, %v1626
    %v1630 = vmul.f32 %v62, %v1626
    %v1635 = vrot.slane %v1627, 2
    %v1636 = vrot.slane %v1628, 2
    %v1637 = vsel %vm182, %v1635, %v1636
    %v1638 = vrot.slane %v1629, 2
    %v1639 = vrot.slane %v1630, 2
    %v1640 = vsel %vm182, %v1638, %v1639
    %v1645 = vadd.f32 %v1573, %v1637
    %v1646 = vadd.f32 %v1574, %v1636
    %v1647 = vadd.f32 %v1575, %v1640
    %v1648 = vadd.f32 %v1576, %v1639
    %s1649 = sld [smem:[#allocation2 + $0x4e]]
    %v1650 = vstv %s1649
    %v1651 = vmul.f32 %v55, %v1650
    %v1652 = vmul.f32 %v56, %v1650
    %v1653 = vmul.f32 %v61, %v1650
    %v1654 = vmul.f32 %v62, %v1650
    %v1659 = vrot.slane %v1651, 2
    %v1660 = vrot.slane %v1652, 2
    %v1661 = vsel %vm182, %v1659, %v1660
    %v1662 = vrot.slane %v1653, 2
    %v1663 = vrot.slane %v1654, 2
    %v1664 = vsel %vm182, %v1662, %v1663
    %v1669 = vadd.f32 %v1597, %v1661
    %v1670 = vadd.f32 %v1598, %v1660
    %v1671 = vadd.f32 %v1599, %v1664
    %v1672 = vadd.f32 %v1600, %v1663
    %s1673 = sld [smem:[#allocation2 + $0x13]]
    %v1674 = vstv %s1673
    %v1675 = vmul.f32 %v55, %v1674
    %v1676 = vmul.f32 %v56, %v1674
    %v1677 = vmul.f32 %v61, %v1674
    %v1678 = vmul.f32 %v62, %v1674
    %1683 = vrot.lane.b32.xlu0 %v1675, 127
    %v1684 = vpop.permute.xlu0 %1683
    %1685 = vrot.lane.b32.xlu0 %v1676, 127
    %v1686 = vpop.permute.xlu0 %1685
    %1687 = vrot.lane.b32.xlu0 %v1677, 127
    %v1688 = vpop.permute.xlu0 %1687
    %1689 = vrot.lane.b32.xlu0 %v1678, 127
    %v1690 = vpop.permute.xlu0 %1689
    %v1695 = vadd.f32 %v1621, %v1684
    %v1696 = vadd.f32 %v1622, %v1686
    %v1697 = vadd.f32 %v1623, %v1688
    %v1698 = vadd.f32 %v1624, %v1690
    %s1699 = sld [smem:[#allocation2 + $0x2e]]
    %v1700 = vstv %s1699
    %v1701 = vmul.f32 %v55, %v1700
    %v1702 = vmul.f32 %v56, %v1700
    %v1703 = vmul.f32 %v61, %v1700
    %v1704 = vmul.f32 %v62, %v1700
    %1709 = vrot.lane.b32.xlu0 %v1701, 127
    %v1710 = vpop.permute.xlu0 %1709
    %1711 = vrot.lane.b32.xlu0 %v1702, 127
    %v1712 = vpop.permute.xlu0 %1711
    %1713 = vrot.lane.b32.xlu0 %v1703, 127
    %v1714 = vpop.permute.xlu0 %1713
    %1715 = vrot.lane.b32.xlu0 %v1704, 127
    %v1716 = vpop.permute.xlu0 %1715
    %v1721 = vadd.f32 %v1645, %v1710
    %v1722 = vadd.f32 %v1646, %v1712
    %v1723 = vadd.f32 %v1647, %v1714
    %v1724 = vadd.f32 %v1648, %v1716
    %s1725 = sld [smem:[#allocation2 + $0x49]]
    %v1726 = vstv %s1725
    %v1727 = vmul.f32 %v55, %v1726
    %v1728 = vmul.f32 %v56, %v1726
    %v1729 = vmul.f32 %v61, %v1726
    %v1730 = vmul.f32 %v62, %v1726
    %1735 = vrot.lane.b32.xlu0 %v1727, 127
    %v1736 = vpop.permute.xlu0 %1735
    %1737 = vrot.lane.b32.xlu0 %v1728, 127
    %v1738 = vpop.permute.xlu0 %1737
    %1739 = vrot.lane.b32.xlu0 %v1729, 127
    %v1740 = vpop.permute.xlu0 %1739
    %1741 = vrot.lane.b32.xlu0 %v1730, 127
    %v1742 = vpop.permute.xlu0 %1741
    %v1747 = vadd.f32 %v1669, %v1736
    %v1748 = vadd.f32 %v1670, %v1738
    %v1749 = vadd.f32 %v1671, %v1740
    %v1750 = vadd.f32 %v1672, %v1742
    %s1751 = sld [smem:[#allocation2 + $0x16]]
    %v1752 = vstv %s1751
    %v1753 = vmul.f32 %v55, %v1752
    %v1754 = vmul.f32 %v56, %v1752
    %v1755 = vmul.f32 %v61, %v1752
    %v1756 = vmul.f32 %v62, %v1752
    %v1761 = vrot.slane %v1753, 1
    %v1762 = vrot.slane %v1754, 1
    %v1763 = vsel %vm109, %v1761, %v1762
    %v1764 = vrot.slane %v1755, 1
    %v1765 = vrot.slane %v1756, 1
    %v1766 = vsel %vm109, %v1764, %v1765
    %1767 = vrot.lane.b32.xlu0 %v1763, 127
    %v1768 = vpop.permute.xlu0 %1767
    %1769 = vrot.lane.b32.xlu0 %v1762, 127
    %v1770 = vpop.permute.xlu0 %1769
    %1771 = vrot.lane.b32.xlu0 %v1766, 127
    %v1772 = vpop.permute.xlu0 %1771
    %1773 = vrot.lane.b32.xlu0 %v1765, 127
    %v1774 = vpop.permute.xlu0 %1773
    %v1779 = vadd.f32 %v1695, %v1768
    %v1780 = vadd.f32 %v1696, %v1770
    %v1781 = vadd.f32 %v1697, %v1772
    %v1782 = vadd.f32 %v1698, %v1774
    %s1783 = sld [smem:[#allocation2 + $0x31]]
    %v1784 = vstv %s1783
    %v1785 = vmul.f32 %v55, %v1784
    %v1786 = vmul.f32 %v56, %v1784
    %v1787 = vmul.f32 %v61, %v1784
    %v1788 = vmul.f32 %v62, %v1784
    %v1793 = vrot.slane %v1785, 1
    %v1794 = vrot.slane %v1786, 1
    %v1795 = vsel %vm109, %v1793, %v1794
    %v1796 = vrot.slane %v1787, 1
    %v1797 = vrot.slane %v1788, 1
    %v1798 = vsel %vm109, %v1796, %v1797
    %1799 = vrot.lane.b32.xlu0 %v1795, 127
    %v1800 = vpop.permute.xlu0 %1799
    %1801 = vrot.lane.b32.xlu0 %v1794, 127
    %v1802 = vpop.permute.xlu0 %1801
    %1803 = vrot.lane.b32.xlu0 %v1798, 127
    %v1804 = vpop.permute.xlu0 %1803
    %1805 = vrot.lane.b32.xlu0 %v1797, 127
    %v1806 = vpop.permute.xlu0 %1805
    %v1811 = vadd.f32 %v1721, %v1800
    %v1812 = vadd.f32 %v1722, %v1802
    %v1813 = vadd.f32 %v1723, %v1804
    %v1814 = vadd.f32 %v1724, %v1806
    %s1815 = sld [smem:[#allocation2 + $0x4c]]
    %v1816 = vstv %s1815
    %v1817 = vmul.f32 %v55, %v1816
    %v1818 = vmul.f32 %v56, %v1816
    %v1819 = vmul.f32 %v61, %v1816
    %v1820 = vmul.f32 %v62, %v1816
    %v1825 = vrot.slane %v1817, 1
    %v1826 = vrot.slane %v1818, 1
    %v1827 = vsel %vm109, %v1825, %v1826
    %v1828 = vrot.slane %v1819, 1
    %v1829 = vrot.slane %v1820, 1
    %v1830 = vsel %vm109, %v1828, %v1829
    %1831 = vrot.lane.b32.xlu0 %v1827, 127
    %v1832 = vpop.permute.xlu0 %1831
    %1833 = vrot.lane.b32.xlu0 %v1826, 127
    %v1834 = vpop.permute.xlu0 %1833
    %1835 = vrot.lane.b32.xlu0 %v1830, 127
    %v1836 = vpop.permute.xlu0 %1835
    %1837 = vrot.lane.b32.xlu0 %v1829, 127
    %v1838 = vpop.permute.xlu0 %1837
    %v1843 = vadd.f32 %v1747, %v1832
    %v1844 = vadd.f32 %v1748, %v1834
    %v1845 = vadd.f32 %v1749, %v1836
    %v1846 = vadd.f32 %v1750, %v1838
    %s1847 = sld [smem:[#allocation2 + $0x19]]
    %v1848 = vstv %s1847
    %v1849 = vmul.f32 %v55, %v1848
    %v1850 = vmul.f32 %v56, %v1848
    %v1851 = vmul.f32 %v61, %v1848
    %v1852 = vmul.f32 %v62, %v1848
    %v1857 = vrot.slane %v1849, 2
    %v1858 = vrot.slane %v1850, 2
    %v1859 = vsel %vm182, %v1857, %v1858
    %v1860 = vrot.slane %v1851, 2
    %v1861 = vrot.slane %v1852, 2
    %v1862 = vsel %vm182, %v1860, %v1861
    %1863 = vrot.lane.b32.xlu0 %v1859, 127
    %v1864 = vpop.permute.xlu0 %1863
    %1865 = vrot.lane.b32.xlu0 %v1858, 127
    %v1866 = vpop.permute.xlu0 %1865
    %1867 = vrot.lane.b32.xlu0 %v1862, 127
    %v1868 = vpop.permute.xlu0 %1867
    %1869 = vrot.lane.b32.xlu0 %v1861, 127
    %v1870 = vpop.permute.xlu0 %1869
    %v1875 = vadd.f32 %v1779, %v1864
    %v1876 = vadd.f32 %v1780, %v1866
    %v1877 = vadd.f32 %v1781, %v1868
    %v1878 = vadd.f32 %v1782, %v1870
    %s1879 = sld [smem:[#allocation2 + $0x34]]
    %v1880 = vstv %s1879
    %v1881 = vmul.f32 %v55, %v1880
    %v1882 = vmul.f32 %v56, %v1880
    %v1883 = vmul.f32 %v61, %v1880
    %v1884 = vmul.f32 %v62, %v1880
    %v1889 = vrot.slane %v1881, 2
    %v1890 = vrot.slane %v1882, 2
    %v1891 = vsel %vm182, %v1889, %v1890
    %v1892 = vrot.slane %v1883, 2
    %v1893 = vrot.slane %v1884, 2
    %v1894 = vsel %vm182, %v1892, %v1893
    %1895 = vrot.lane.b32.xlu0 %v1891, 127
    %v1896 = vpop.permute.xlu0 %1895
    %1897 = vrot.lane.b32.xlu0 %v1890, 127
    %v1898 = vpop.permute.xlu0 %1897
    %1899 = vrot.lane.b32.xlu0 %v1894, 127
    %v1900 = vpop.permute.xlu0 %1899
    %1901 = vrot.lane.b32.xlu0 %v1893, 127
    %v1902 = vpop.permute.xlu0 %1901
    %v1907 = vadd.f32 %v1811, %v1896
    %v1908 = vadd.f32 %v1812, %v1898
    %v1909 = vadd.f32 %v1813, %v1900
    %v1910 = vadd.f32 %v1814, %v1902
    %s1911 = sld [smem:[#allocation2 + $0x4f]]
    %v1912 = vstv %s1911
    %v1913 = vmul.f32 %v55, %v1912
    %v1914 = vmul.f32 %v56, %v1912
    %v1915 = vmul.f32 %v61, %v1912
    %v1916 = vmul.f32 %v62, %v1912
    %v1921 = vrot.slane %v1913, 2
    %v1922 = vrot.slane %v1914, 2
    %v1923 = vsel %vm182, %v1921, %v1922
    %v1924 = vrot.slane %v1915, 2
    %v1925 = vrot.slane %v1916, 2
    %v1926 = vsel %vm182, %v1924, %v1925
    %1927 = vrot.lane.b32.xlu0 %v1923, 127
    %v1928 = vpop.permute.xlu0 %1927
    %1929 = vrot.lane.b32.xlu0 %v1922, 127
    %v1930 = vpop.permute.xlu0 %1929
    %1931 = vrot.lane.b32.xlu0 %v1926, 127
    %v1932 = vpop.permute.xlu0 %1931
    %1933 = vrot.lane.b32.xlu0 %v1925, 127
    %v1934 = vpop.permute.xlu0 %1933
    %v1939 = vadd.f32 %v1843, %v1928
    %v1940 = vadd.f32 %v1844, %v1930
    %v1941 = vadd.f32 %v1845, %v1932
    %v1942 = vadd.f32 %v1846, %v1934
    %s1943 = sld [smem:[#allocation2 + $0x14]]
    %v1944 = vstv %s1943
    %v1945 = vmul.f32 %v55, %v1944
    %v1946 = vmul.f32 %v56, %v1944
    %v1947 = vmul.f32 %v61, %v1944
    %v1948 = vmul.f32 %v62, %v1944
    %1953 = vrot.lane.b32.xlu0 %v1945, 126
    %v1954 = vpop.permute.xlu0 %1953
    %1955 = vrot.lane.b32.xlu0 %v1946, 126
    %v1956 = vpop.permute.xlu0 %1955
    %1957 = vrot.lane.b32.xlu0 %v1947, 126
    %v1958 = vpop.permute.xlu0 %1957
    %1959 = vrot.lane.b32.xlu0 %v1948, 126
    %v1960 = vpop.permute.xlu0 %1959
    %v1965 = vadd.f32 %v1875, %v1954
    %v1966 = vadd.f32 %v1876, %v1956
    %v1967 = vadd.f32 %v1877, %v1958
    %v1968 = vadd.f32 %v1878, %v1960
    %s1969 = sld [smem:[#allocation2 + $0x2f]]
    %v1970 = vstv %s1969
    %v1971 = vmul.f32 %v55, %v1970
    %v1972 = vmul.f32 %v56, %v1970
    %v1973 = vmul.f32 %v61, %v1970
    %v1974 = vmul.f32 %v62, %v1970
    %1979 = vrot.lane.b32.xlu0 %v1971, 126
    %v1980 = vpop.permute.xlu0 %1979
    %1981 = vrot.lane.b32.xlu0 %v1972, 126
    %v1982 = vpop.permute.xlu0 %1981
    %1983 = vrot.lane.b32.xlu0 %v1973, 126
    %v1984 = vpop.permute.xlu0 %1983
    %1985 = vrot.lane.b32.xlu0 %v1974, 126
    %v1986 = vpop.permute.xlu0 %1985
    %v1991 = vadd.f32 %v1907, %v1980
    %v1992 = vadd.f32 %v1908, %v1982
    %v1993 = vadd.f32 %v1909, %v1984
    %v1994 = vadd.f32 %v1910, %v1986
    %s1995 = sld [smem:[#allocation2 + $0x4a]]
    %v1996 = vstv %s1995
    %v1997 = vmul.f32 %v55, %v1996
    %v1998 = vmul.f32 %v56, %v1996
    %v1999 = vmul.f32 %v61, %v1996
    %v2000 = vmul.f32 %v62, %v1996
    %2005 = vrot.lane.b32.xlu0 %v1997, 126
    %v2006 = vpop.permute.xlu0 %2005
    %2007 = vrot.lane.b32.xlu0 %v1998, 126
    %v2008 = vpop.permute.xlu0 %2007
    %2009 = vrot.lane.b32.xlu0 %v1999, 126
    %v2010 = vpop.permute.xlu0 %2009
    %2011 = vrot.lane.b32.xlu0 %v2000, 126
    %v2012 = vpop.permute.xlu0 %2011
    %v2017 = vadd.f32 %v1939, %v2006
    %v2018 = vadd.f32 %v1940, %v2008
    %v2019 = vadd.f32 %v1941, %v2010
    %v2020 = vadd.f32 %v1942, %v2012
    %s2021 = sld [smem:[#allocation2 + $0x17]]
    %v2022 = vstv %s2021
    %v2023 = vmul.f32 %v55, %v2022
    %v2024 = vmul.f32 %v56, %v2022
    %v2025 = vmul.f32 %v61, %v2022
    %v2026 = vmul.f32 %v62, %v2022
    %v2031 = vrot.slane %v2023, 1
    %v2032 = vrot.slane %v2024, 1
    %v2033 = vsel %vm109, %v2031, %v2032
    %v2034 = vrot.slane %v2025, 1
    %v2035 = vrot.slane %v2026, 1
    %v2036 = vsel %vm109, %v2034, %v2035
    %2037 = vrot.lane.b32.xlu0 %v2033, 126
    %v2038 = vpop.permute.xlu0 %2037
    %2039 = vrot.lane.b32.xlu0 %v2032, 126
    %v2040 = vpop.permute.xlu0 %2039
    %2041 = vrot.lane.b32.xlu0 %v2036, 126
    %v2042 = vpop.permute.xlu0 %2041
    %2043 = vrot.lane.b32.xlu0 %v2035, 126
    %v2044 = vpop.permute.xlu0 %2043
    %v2049 = vadd.f32 %v1965, %v2038
    %v2050 = vadd.f32 %v1966, %v2040
    %v2051 = vadd.f32 %v1967, %v2042
    %v2052 = vadd.f32 %v1968, %v2044
    %s2053 = sld [smem:[#allocation2 + $0x32]]
    %v2054 = vstv %s2053
    %v2055 = vmul.f32 %v55, %v2054
    %v2056 = vmul.f32 %v56, %v2054
    %v2057 = vmul.f32 %v61, %v2054
    %v2058 = vmul.f32 %v62, %v2054
    %v2063 = vrot.slane %v2055, 1
    %v2064 = vrot.slane %v2056, 1
    %v2065 = vsel %vm109, %v2063, %v2064
    %v2066 = vrot.slane %v2057, 1
    %v2067 = vrot.slane %v2058, 1
    %v2068 = vsel %vm109, %v2066, %v2067
    %2069 = vrot.lane.b32.xlu0 %v2065, 126
    %v2070 = vpop.permute.xlu0 %2069
    %2071 = vrot.lane.b32.xlu0 %v2064, 126
    %v2072 = vpop.permute.xlu0 %2071
    %2073 = vrot.lane.b32.xlu0 %v2068, 126
    %v2074 = vpop.permute.xlu0 %2073
    %2075 = vrot.lane.b32.xlu0 %v2067, 126
    %v2076 = vpop.permute.xlu0 %2075
    %v2081 = vadd.f32 %v1991, %v2070
    %v2082 = vadd.f32 %v1992, %v2072
    %v2083 = vadd.f32 %v1993, %v2074
    %v2084 = vadd.f32 %v1994, %v2076
    %s2085 = sld [smem:[#allocation2 + $0x4d]]
    %v2086 = vstv %s2085
    %v2087 = vmul.f32 %v55, %v2086
    %v2088 = vmul.f32 %v56, %v2086
    %v2089 = vmul.f32 %v61, %v2086
    %v2090 = vmul.f32 %v62, %v2086
    %v2095 = vrot.slane %v2087, 1
    %v2096 = vrot.slane %v2088, 1
    %v2097 = vsel %vm109, %v2095, %v2096
    %v2098 = vrot.slane %v2089, 1
    %v2099 = vrot.slane %v2090, 1
    %v2100 = vsel %vm109, %v2098, %v2099
    %2101 = vrot.lane.b32.xlu0 %v2097, 126
    %v2102 = vpop.permute.xlu0 %2101
    %2103 = vrot.lane.b32.xlu0 %v2096, 126
    %v2104 = vpop.permute.xlu0 %2103
    %2105 = vrot.lane.b32.xlu0 %v2100, 126
    %v2106 = vpop.permute.xlu0 %2105
    %2107 = vrot.lane.b32.xlu0 %v2099, 126
    %v2108 = vpop.permute.xlu0 %2107
    %v2113 = vadd.f32 %v2017, %v2102
    %v2114 = vadd.f32 %v2018, %v2104
    %v2115 = vadd.f32 %v2019, %v2106
    %v2116 = vadd.f32 %v2020, %v2108
    %s2117 = sld [smem:[#allocation2 + $0x1a]]
    %v2118 = vstv %s2117
    %v2119 = vmul.f32 %v55, %v2118
    %v2120 = vmul.f32 %v56, %v2118
    %v2121 = vmul.f32 %v61, %v2118
    %v2122 = vmul.f32 %v62, %v2118
    %v2127 = vrot.slane %v2119, 2
    %v2128 = vrot.slane %v2120, 2
    %v2129 = vsel %vm182, %v2127, %v2128
    %v2130 = vrot.slane %v2121, 2
    %v2131 = vrot.slane %v2122, 2
    %v2132 = vsel %vm182, %v2130, %v2131
    %2133 = vrot.lane.b32.xlu0 %v2129, 126
    %v2134 = vpop.permute.xlu0 %2133
    %2135 = vrot.lane.b32.xlu0 %v2128, 126
    %v2136 = vpop.permute.xlu0 %2135
    %2137 = vrot.lane.b32.xlu0 %v2132, 126
    %v2138 = vpop.permute.xlu0 %2137
    %2139 = vrot.lane.b32.xlu0 %v2131, 126
    %v2140 = vpop.permute.xlu0 %2139
    %v2145 = vadd.f32 %v2049, %v2134
    %v2146 = vadd.f32 %v2050, %v2136
    %v2147 = vadd.f32 %v2051, %v2138
    %v2148 = vadd.f32 %v2052, %v2140
    %s2149 = sld [smem:[#allocation2 + $0x35]]
    %v2150 = vstv %s2149
    %v2151 = vmul.f32 %v55, %v2150
    %v2152 = vmul.f32 %v56, %v2150
    %v2153 = vmul.f32 %v61, %v2150
    %v2154 = vmul.f32 %v62, %v2150
    %v2159 = vrot.slane %v2151, 2
    %v2160 = vrot.slane %v2152, 2
    %v2161 = vsel %vm182, %v2159, %v2160
    %v2162 = vrot.slane %v2153, 2
    %v2163 = vrot.slane %v2154, 2
    %v2164 = vsel %vm182, %v2162, %v2163
    %2165 = vrot.lane.b32.xlu0 %v2161, 126
    %v2166 = vpop.permute.xlu0 %2165
    %2167 = vrot.lane.b32.xlu0 %v2160, 126
    %v2168 = vpop.permute.xlu0 %2167
    %2169 = vrot.lane.b32.xlu0 %v2164, 126
    %v2170 = vpop.permute.xlu0 %2169
    %2171 = vrot.lane.b32.xlu0 %v2163, 126
    %v2172 = vpop.permute.xlu0 %2171
    %v2177 = vadd.f32 %v2081, %v2166
    %v2178 = vadd.f32 %v2082, %v2168
    %v2179 = vadd.f32 %v2083, %v2170
    %v2180 = vadd.f32 %v2084, %v2172
    %s2181 = sld [smem:[#allocation2 + $0x50]]
    %v2182 = vstv %s2181
    %v2183 = vmul.f32 %v55, %v2182
    %v2184 = vmul.f32 %v56, %v2182
    %v2185 = vmul.f32 %v61, %v2182
    %v2186 = vmul.f32 %v62, %v2182
    %v2191 = vrot.slane %v2183, 2
    %v2192 = vrot.slane %v2184, 2
    %v2193 = vsel %vm182, %v2191, %v2192
    %v2194 = vrot.slane %v2185, 2
    %v2195 = vrot.slane %v2186, 2
    %v2196 = vsel %vm182, %v2194, %v2195
    %2197 = vrot.lane.b32.xlu0 %v2193, 126
    %v2198 = vpop.permute.xlu0 %2197
    %2199 = vrot.lane.b32.xlu0 %v2192, 126
    %v2200 = vpop.permute.xlu0 %2199
    %2201 = vrot.lane.b32.xlu0 %v2196, 126
    %v2202 = vpop.permute.xlu0 %2201
    %2203 = vrot.lane.b32.xlu0 %v2195, 126
    %v2204 = vpop.permute.xlu0 %2203
    %v2209 = vadd.f32 %v2113, %v2198
    %v2210 = vadd.f32 %v2114, %v2200
    %v2211 = vadd.f32 %v2115, %v2202
    %v2212 = vadd.f32 %v2116, %v2204
    %vm2213 = vcmask 113664
    %2214 = vst.msk [vmem:[%s3] sm:$0xff] %vm2213, %v2145
    %vm2215 = vcmask 111616
    %2216 = vst.msk [vmem:[%s3 + $0x8] sm:$0x3f] %vm2215, %v2146
    %2217 = vst.msk [vmem:[%s3 + $0x10] sm:$0xff] %vm2213, %v2177
    %2218 = vst.msk [vmem:[%s3 + $0x18] sm:$0x3f] %vm2215, %v2178
    %2219 = vst.msk [vmem:[%s3 + $0x20] sm:$0xff] %vm2213, %v2209
    %2220 = vst.msk [vmem:[%s3 + $0x28] sm:$0x3f] %vm2215, %v2210
    %2221 = vst.msk [vmem:[%s3 + $0x30] sm:$0xff] %vm2213, %v2147
    %2222 = vst.msk [vmem:[%s3 + $0x38] sm:$0x3f] %vm2215, %v2148
    %2223 = vst.msk [vmem:[%s3 + $0x40] sm:$0xff] %vm2213, %v2179
    %2224 = vst.msk [vmem:[%s3 + $0x48] sm:$0x3f] %vm2215, %v2180
    %2225 = vst.msk [vmem:[%s3 + $0x50] sm:$0xff] %vm2213, %v2211
    %2226 = vst.msk [vmem:[%s3 + $0x58] sm:$0x3f] %vm2215, %v2212
    // Predicated region
    $region26: #{tpu_custom_call.1} parent=1 // pred_check
      _
    $region27: #{tpu_custom_call.1} parent=1 // pred_check_branch
      %2228 = sbr.rel (0) target = $region29
    $region28: #{tpu_custom_call.1} parent=1 // pred_region
      _
    $region29: #{tpu_custom_call.1} parent=1 // pred_fallthru
      _
    // Predicated region
    $region30: #{tpu_custom_call.1} parent=1 // pred_check
      _
    $region31: #{tpu_custom_call.1} parent=1 // pred_check_branch
      %2230 = sbr.rel (0) target = $region33
    $region32: #{tpu_custom_call.1} parent=1 // pred_region
      _
    $region33: #{tpu_custom_call.1} parent=1 // pred_fallthru
      _
    %2231 = vsyncpa [#allocation3], 1
    %2232 = vsyncpa [#allocation4], 1
    %2233 = vsyncpa [#allocation5], 1

</llo_original>
